<compile_context>
chip_gen: v6e
topology: v6e:2x2x1
jax: 0.10.0
libtpu: 0.0.40
codegen_flags: <defaults>
</compile_context>

<pallas_src>
import math

import jax
import jax.numpy as jnp
from jax.experimental import pallas as pl
from jax.experimental.pallas import tpu as pltpu  # noqa: F401  (kept for TPU-specific extensions)

# ----------------------------- config ---------------------------------------
VOCAB = 100
HIDDEN = 32
N_LAYERS = 2
N_HEADS = 2
HEAD_DIM = HIDDEN // N_HEADS
INTERMEDIATE = 64
MAX_POS = 16
TYPE_VOCAB = 2
NUM_NER_LABELS = 5
HEAD_PAD = 128          # lane-dense padded width for the NER head output
LN_EPS = 1e-12

BATCH = 2
SEQ = 8
TOKENS = BATCH * SEQ

_REFS_PER_LAYER = 12    # wqkv, bqkv, wo, bo, ln1g, ln1b, wi, bi, wo2, bo2, ln2g, ln2b


# ----------------------------- in-kernel helpers ------------------------------
def _layernorm(h, g, b):
    # normalize over the last (lane) dim, f32 math
    mean = jnp.mean(h, axis=-1, keepdims=True)
    var = jnp.mean((h - mean) * (h - mean), axis=-1, keepdims=True)
    return (h - mean) * jax.lax.rsqrt(var + LN_EPS) * g + b


def _gelu_tanh(h):
    # TODO(synk): HF BERT default act is exact erf-GELU; tanh approximation used
    # since tanh is EUP-native on all TPU generations (logits differ ~1e-3).
    c = math.sqrt(2.0 / math.pi)
    return 0.5 * h * (1.0 + jnp.tanh(c * (h + 0.044715 * h * h * h)))


def _encoder_layer_body(x, mask, wqkv, bqkv, wo, bo, ln1g, ln1b,
                        wi, bi, wo2, bo2, ln2g, ln2b):
    """One BERT encoder layer on VMEM-resident values (all arrays, no refs)."""
    x_bf = x.astype(jnp.bfloat16)

    # --- fused QKV projection: one (B*S,H)@(H,3H) MXU matmul ------------------
    # 1/sqrt(head_dim) has been pre-folded into the Q third of wqkv/bqkv.
    qkv = jnp.dot(x_bf, wqkv, preferred_element_type=jnp.float32) + bqkv
    q = qkv[:, 0 * HIDDEN:1 * HIDDEN]
    k = qkv[:, 1 * HIDDEN:2 * HIDDEN]
    v = qkv[:, 2 * HIDDEN:3 * HIDDEN]

    # --- attention: all (batch, head) pairs statically unrolled ---------------
    dn = (((1,), (1,)), ((), ()))                    # q @ k^T via dot_general (no k.T copy)
    ctx_rows = []
    for b in range(BATCH):
        r0, r1 = b * SEQ, (b + 1) * SEQ
        mask_b = mask[b:b + 1, :]                    # (1, S) additive, broadcast over query rows
        head_ctx = []
        for h in range(N_HEADS):
            c0, c1 = h * HEAD_DIM, (h + 1) * HEAD_DIM
            q_bh = q[r0:r1, c0:c1].astype(jnp.bfloat16)   # (S, HD)
            k_bh = k[r0:r1, c0:c1].astype(jnp.bfloat16)
            v_bh = v[r0:r1, c0:c1].astype(jnp.bfloat16)
            scores = jax.lax.dot_general(
                q_bh, k_bh, dn, preferred_element_type=jnp.float32)  # (S, S) f32
            scores = scores + mask_b                 # mask + softmax stay in f32
            m = jnp.max(scores, axis=-1, keepdims=True)
            p = jnp.exp(scores - m)
            p = p * pl.reciprocal(jnp.sum(p, axis=-1, keepdims=True), approx=True)
            head_ctx.append(
                jnp.dot(p.astype(jnp.bfloat16), v_bh,
                        preferred_element_type=jnp.float32))          # (S, HD)
        ctx_rows.append(jnp.concatenate(head_ctx, axis=1))            # (S, H)
    ctx = jnp.concatenate(ctx_rows, axis=0)                           # (B*S, H)

    # --- attention output projection + residual + LayerNorm -------------------
    attn = jnp.dot(ctx.astype(jnp.bfloat16), wo,
                   preferred_element_type=jnp.float32) + bo
    x1 = _layernorm(attn + x, ln1g, ln1b)

    # --- FFN (GELU) + residual + LayerNorm ------------------------------------
    ffn = jnp.dot(x1.astype(jnp.bfloat16), wi,
                  preferred_element_type=jnp.float32) + bi
    ffn = _gelu_tanh(ffn)
    ffn = jnp.dot(ffn.astype(jnp.bfloat16), wo2,
                  preferred_element_type=jnp.float32) + bo2
    return _layernorm(ffn + x1, ln2g, ln2b)


# ----------------------------- the single fused kernel ------------------------
def _bert_fwd_kernel(*refs):
    """emb LN -> N_LAYERS encoder layers -> NER head, all in one launch."""
    emb_ref, mask_ref, emb_g_ref, emb_b_ref = refs[:4]
    layer_refs = refs[4:4 + N_LAYERS * _REFS_PER_LAYER]
    ner_w_ref, ner_b_ref, o_ref = refs[4 + N_LAYERS * _REFS_PER_LAYER:]

    mask = mask_ref[...]                                               # (B, S) f32
    x = _layernorm(emb_ref[...], emb_g_ref[...], emb_b_ref[...])       # (B*S, H) f32

    for l in range(N_LAYERS):
        base = l * _REFS_PER_LAYER
        (wqkv, bqkv, wo, bo, ln1g, ln1b,
         wi, bi, wo2, bo2, ln2g, ln2b) = (r[...] for r in layer_refs[base:base + _REFS_PER_LAYER])
        x = _encoder_layer_body(x, mask, wqkv, bqkv, wo, bo, ln1g, ln1b,
                                wi, bi, wo2, bo2, ln2g, ln2b)

    # NER head: output padded to 128 lanes -> unmasked stores; wrapper slices.
    # (ner_dropout is identity in inference mode.)
    o_ref[...] = (jnp.dot(x.astype(jnp.bfloat16), ner_w_ref[...],
                          preferred_element_type=jnp.float32) + ner_b_ref[...])


# ----------------------------- kernel wrapper ---------------------------------
# TODO(synk): at real BERT sizes, split this back into one kernel per layer and
# tile the M (= B*S) dimension with a 'parallel' grid axis so blocks fit v7x's
# 64 MiB VMEM and both TensorCores are used; at this toy size a single
# whole-model, whole-array-VMEM launch is optimal (launch-overhead bound).
def bert_ner_logits(fused, emb, add_mask):
    args = [emb, add_mask, fused["emb_ln_g"], fused["emb_ln_b"]]
    for lp in fused["layers"]:
        args += [lp["wqkv"], lp["bqkv"], lp["wo"], lp["bo"],
                 lp["ln1_g"], lp["ln1_b"],
                 lp["wi"], lp["bi"], lp["wo2"], lp["bo2"],
                 lp["ln2_g"], lp["ln2_b"]]
    args += [fused["ner_w"], fused["ner_b"]]

    out = pl.pallas_call(
        _bert_fwd_kernel,
        out_shape=jax.ShapeDtypeStruct((emb.shape[0], HEAD_PAD), jnp.float32),
    )(*args)
    return out[:, :NUM_NER_LABELS]


# ----------------------------- parameters -------------------------------------
def init_params(key):
    """HF-BERT-like parameter layout (f32), deterministic synthetic init."""
    def nrm(k, shape):
        return (jax.random.normal(k, shape, jnp.float32) * 0.02).astype(jnp.float32)

    keys = iter(jax.random.split(key, 8 + N_LAYERS * 8))
    params = {
        "word_emb": nrm(next(keys), (VOCAB, HIDDEN)),
        "pos_emb": nrm(next(keys), (MAX_POS, HIDDEN)),
        "type_emb": nrm(next(keys), (TYPE_VOCAB, HIDDEN)),
        "emb_ln_g": jnp.ones((HIDDEN,), jnp.float32),
        "emb_ln_b": jnp.zeros((HIDDEN,), jnp.float32),
        "ner_w": nrm(next(keys), (HIDDEN, NUM_NER_LABELS)),
        "ner_b": jnp.zeros((NUM_NER_LABELS,), jnp.float32),
        "layers": [],
    }
    for _ in range(N_LAYERS):
        params["layers"].append({
            "wq": nrm(next(keys), (HIDDEN, HIDDEN)), "bq": jnp.zeros((HIDDEN,), jnp.float32),
            "wk": nrm(next(keys), (HIDDEN, HIDDEN)), "bk": jnp.zeros((HIDDEN,), jnp.float32),
            "wv": nrm(next(keys), (HIDDEN, HIDDEN)), "bv": jnp.zeros((HIDDEN,), jnp.float32),
            "wo": nrm(next(keys), (HIDDEN, HIDDEN)), "bo": jnp.zeros((HIDDEN,), jnp.float32),
            "ln1_g": jnp.ones((HIDDEN,), jnp.float32), "ln1_b": jnp.zeros((HIDDEN,), jnp.float32),
            "wi": nrm(next(keys), (HIDDEN, INTERMEDIATE)), "bi": jnp.zeros((INTERMEDIATE,), jnp.float32),
            "wo2": nrm(next(keys), (INTERMEDIATE, HIDDEN)), "bo2": jnp.zeros((HIDDEN,), jnp.float32),
            "ln2_g": jnp.ones((HIDDEN,), jnp.float32), "ln2_b": jnp.zeros((HIDDEN,), jnp.float32),
        })
    return params


def prepare_fused_params(params):
    """One-time (outside jit) repack: concat QKV, fold attention scale, cast
    matmul weights to bf16 (halves weight DMA bytes), pad NER head to 128 lanes.
    LayerNorm params / biases stay f32 (elementwise math is f32 on all chips)."""
    scale = 1.0 / math.sqrt(HEAD_DIM)
    fused = {
        "word_emb": params["word_emb"],
        "pos_emb": params["pos_emb"],
        "type_emb": params["type_emb"],
        "emb_ln_g": params["emb_ln_g"].reshape(1, HIDDEN),
        "emb_ln_b": params["emb_ln_b"].reshape(1, HIDDEN),
        "ner_w": jnp.zeros((HIDDEN, HEAD_PAD), jnp.bfloat16)
                   .at[:, :NUM_NER_LABELS].set(params["ner_w"].astype(jnp.bfloat16)),
        "ner_b": jnp.zeros((1, HEAD_PAD), jnp.float32)
                   .at[0, :NUM_NER_LABELS].set(params["ner_b"]),
        "layers": [],
    }
    for layer in params["layers"]:
        wqkv = jnp.concatenate([layer["wq"] * scale, layer["wk"], layer["wv"]], axis=1)
        bqkv = jnp.concatenate([layer["bq"] * scale, layer["bk"], layer["bv"]], axis=0)
        fused["layers"].append({
            "wqkv": wqkv.astype(jnp.bfloat16),
            "bqkv": bqkv.reshape(1, 3 * HIDDEN).astype(jnp.float32),
            "wo": layer["wo"].astype(jnp.bfloat16),
            "bo": layer["bo"].reshape(1, HIDDEN),
            "ln1_g": layer["ln1_g"].reshape(1, HIDDEN),
            "ln1_b": layer["ln1_b"].reshape(1, HIDDEN),
            "wi": layer["wi"].astype(jnp.bfloat16),
            "bi": layer["bi"].reshape(1, INTERMEDIATE),
            "wo2": layer["wo2"].astype(jnp.bfloat16),
            "bo2": layer["bo2"].reshape(1, HIDDEN),
            "ln2_g": layer["ln2_g"].reshape(1, HIDDEN),
            "ln2_b": layer["ln2_b"].reshape(1, HIDDEN),
        })
    return fused


# ----------------------------- forward ----------------------------------------
def bert_ner_forward(fused, input_ids, attention_mask):
    """Mirrors BERT.forward: encoder -> ner_dropout (eval = identity) -> Linear head."""
    B, S = input_ids.shape

    # embeddings: gathers are tiny XLA glue; everything downstream is one Pallas launch.
    word = fused["word_emb"][input_ids]                       # (B, S, H)
    pos = fused["pos_emb"][jnp.arange(S)][None, :, :]         # (1, S, H)
    tok_type = fused["type_emb"][0][None, None, :]            # (1, 1, H)  (token_type_ids = 0)
    emb = (word + pos + tok_type).astype(jnp.float32).reshape(B * S, HIDDEN)

    # additive attention mask (B, S), kept f32 end-to-end
    add_mask = (1.0 - attention_mask.astype(jnp.float32)) * -1e9

    logits = bert_ner_logits(fused, emb, add_mask)            # (B*S, L)
    return logits.reshape(B, S, NUM_NER_LABELS)


# ----------------------------- main -------------------------------------------
if __name__ == "__main__":
    key = jax.random.PRNGKey(0)
    k_param, k_ids = jax.random.split(key)

    params = init_params(k_param)
    fused = prepare_fused_params(params)        # one-time repack, outside jit

    input_ids = jax.random.randint(k_ids, (BATCH, SEQ), 0, VOCAB, dtype=jnp.int32)
    # second example padded for the last 3 tokens
    attention_mask = jnp.array([[1] * SEQ, [1] * (SEQ - 3) + [0] * 3], dtype=jnp.int32)

    fwd = jax.jit(bert_ner_forward)
    logits = fwd(fused, input_ids, attention_mask)
    jax.block_until_ready(logits)

    assert logits.shape == (BATCH, SEQ, NUM_NER_LABELS)
    assert logits.dtype == jnp.float32
    assert bool(jnp.all(jnp.isfinite(logits)))
    print("KERNEL_OK")
</pallas_src>

<mosaic_0001>
module attributes {stable_mosaic.version = 11 : i64} {
  func.func @_bert_fwd_kernel(%arg0: memref<16x32xf32, #tpu.memory_space<vmem>>, %arg1: memref<2x8xf32, #tpu.memory_space<vmem>>, %arg2: memref<1x32xf32, #tpu.memory_space<vmem>>, %arg3: memref<1x32xf32, #tpu.memory_space<vmem>>, %arg4: memref<32x96xbf16, #tpu.memory_space<vmem>>, %arg5: memref<1x96xf32, #tpu.memory_space<vmem>>, %arg6: memref<32x32xbf16, #tpu.memory_space<vmem>>, %arg7: memref<1x32xf32, #tpu.memory_space<vmem>>, %arg8: memref<1x32xf32, #tpu.memory_space<vmem>>, %arg9: memref<1x32xf32, #tpu.memory_space<vmem>>, %arg10: memref<32x64xbf16, #tpu.memory_space<vmem>>, %arg11: memref<1x64xf32, #tpu.memory_space<vmem>>, %arg12: memref<64x32xbf16, #tpu.memory_space<vmem>>, %arg13: memref<1x32xf32, #tpu.memory_space<vmem>>, %arg14: memref<1x32xf32, #tpu.memory_space<vmem>>, %arg15: memref<1x32xf32, #tpu.memory_space<vmem>>, %arg16: memref<32x96xbf16, #tpu.memory_space<vmem>>, %arg17: memref<1x96xf32, #tpu.memory_space<vmem>>, %arg18: memref<32x32xbf16, #tpu.memory_space<vmem>>, %arg19: memref<1x32xf32, #tpu.memory_space<vmem>>, %arg20: memref<1x32xf32, #tpu.memory_space<vmem>>, %arg21: memref<1x32xf32, #tpu.memory_space<vmem>>, %arg22: memref<32x64xbf16, #tpu.memory_space<vmem>>, %arg23: memref<1x64xf32, #tpu.memory_space<vmem>>, %arg24: memref<64x32xbf16, #tpu.memory_space<vmem>>, %arg25: memref<1x32xf32, #tpu.memory_space<vmem>>, %arg26: memref<1x32xf32, #tpu.memory_space<vmem>>, %arg27: memref<1x32xf32, #tpu.memory_space<vmem>>, %arg28: memref<32x128xbf16, #tpu.memory_space<vmem>>, %arg29: memref<1x128xf32, #tpu.memory_space<vmem>>, %arg30: memref<16x128xf32, #tpu.memory_space<vmem>>) attributes {dimension_semantics = [], scalar_prefetch = 0 : i64, scratch_operands = 0 : i64, tpu.core_type = #tpu.core_type<tc>} {
    %c0 = arith.constant 0 : index
    %c0_0 = arith.constant 0 : index
    %0 = vector.load %arg1[%c0, %c0_0] : memref<2x8xf32, #tpu.memory_space<vmem>>, vector<2x8xf32>
    %c0_1 = arith.constant 0 : index
    %c0_2 = arith.constant 0 : index
    %1 = vector.load %arg0[%c0_1, %c0_2] : memref<16x32xf32, #tpu.memory_space<vmem>>, vector<16x32xf32>
    %c0_3 = arith.constant 0 : index
    %c0_4 = arith.constant 0 : index
    %2 = vector.load %arg2[%c0_3, %c0_4] : memref<1x32xf32, #tpu.memory_space<vmem>>, vector<1x32xf32>
    %c0_5 = arith.constant 0 : index
    %c0_6 = arith.constant 0 : index
    %3 = vector.load %arg3[%c0_5, %c0_6] : memref<1x32xf32, #tpu.memory_space<vmem>>, vector<1x32xf32>
    %cst = arith.constant dense<0.000000e+00> : vector<16xf32>
    %4 = vector.multi_reduction <add>, %1, %cst [1] : vector<16x32xf32> to vector<16xf32>
    %5 = vector.shape_cast %4 : vector<16xf32> to vector<16x1xf32>
    %cst_7 = arith.constant 3.200000e+01 : f32
    %6 = vector.broadcast %cst_7 : f32 to vector<16x1xf32>
    %7 = arith.divf %5, %6 : vector<16x1xf32>
    %8 = vector.broadcast %7 : vector<16x1xf32> to vector<16x32xf32>
    %9 = arith.subf %1, %8 : vector<16x32xf32>
    %10 = vector.broadcast %7 : vector<16x1xf32> to vector<16x32xf32>
    %11 = arith.subf %1, %10 : vector<16x32xf32>
    %12 = arith.mulf %9, %11 : vector<16x32xf32>
    %cst_8 = arith.constant dense<0.000000e+00> : vector<16xf32>
    %13 = vector.multi_reduction <add>, %12, %cst_8 [1] : vector<16x32xf32> to vector<16xf32>
    %14 = vector.shape_cast %13 : vector<16xf32> to vector<16x1xf32>
    %cst_9 = arith.constant 3.200000e+01 : f32
    %15 = vector.broadcast %cst_9 : f32 to vector<16x1xf32>
    %16 = arith.divf %14, %15 : vector<16x1xf32>
    %17 = vector.broadcast %7 : vector<16x1xf32> to vector<16x32xf32>
    %18 = arith.subf %1, %17 : vector<16x32xf32>
    %cst_10 = arith.constant 9.99999996E-13 : f32
    %19 = vector.broadcast %cst_10 : f32 to vector<16x1xf32>
    %20 = arith.addf %16, %19 : vector<16x1xf32>
    %21 = math.rsqrt %20 : vector<16x1xf32>
    %22 = vector.broadcast %21 : vector<16x1xf32> to vector<16x32xf32>
    %23 = arith.mulf %18, %22 : vector<16x32xf32>
    %24 = vector.broadcast %2 : vector<1x32xf32> to vector<16x32xf32>
    %25 = arith.mulf %23, %24 : vector<16x32xf32>
    %26 = vector.broadcast %3 : vector<1x32xf32> to vector<16x32xf32>
    %27 = arith.addf %25, %26 : vector<16x32xf32>
    %c0_11 = arith.constant 0 : index
    %c0_12 = arith.constant 0 : index
    %28 = vector.load %arg4[%c0_11, %c0_12] : memref<32x96xbf16, #tpu.memory_space<vmem>>, vector<32x96xbf16>
    %c0_13 = arith.constant 0 : index
    %c0_14 = arith.constant 0 : index
    %29 = vector.load %arg5[%c0_13, %c0_14] : memref<1x96xf32, #tpu.memory_space<vmem>>, vector<1x96xf32>
    %c0_15 = arith.constant 0 : index
    %c0_16 = arith.constant 0 : index
    %30 = vector.load %arg6[%c0_15, %c0_16] : memref<32x32xbf16, #tpu.memory_space<vmem>>, vector<32x32xbf16>
    %c0_17 = arith.constant 0 : index
    %c0_18 = arith.constant 0 : index
    %31 = vector.load %arg7[%c0_17, %c0_18] : memref<1x32xf32, #tpu.memory_space<vmem>>, vector<1x32xf32>
    %c0_19 = arith.constant 0 : index
    %c0_20 = arith.constant 0 : index
    %32 = vector.load %arg8[%c0_19, %c0_20] : memref<1x32xf32, #tpu.memory_space<vmem>>, vector<1x32xf32>
    %c0_21 = arith.constant 0 : index
    %c0_22 = arith.constant 0 : index
    %33 = vector.load %arg9[%c0_21, %c0_22] : memref<1x32xf32, #tpu.memory_space<vmem>>, vector<1x32xf32>
    %c0_23 = arith.constant 0 : index
    %c0_24 = arith.constant 0 : index
    %34 = vector.load %arg10[%c0_23, %c0_24] : memref<32x64xbf16, #tpu.memory_space<vmem>>, vector<32x64xbf16>
    %c0_25 = arith.constant 0 : index
    %c0_26 = arith.constant 0 : index
    %35 = vector.load %arg11[%c0_25, %c0_26] : memref<1x64xf32, #tpu.memory_space<vmem>>, vector<1x64xf32>
    %c0_27 = arith.constant 0 : index
    %c0_28 = arith.constant 0 : index
    %36 = vector.load %arg12[%c0_27, %c0_28] : memref<64x32xbf16, #tpu.memory_space<vmem>>, vector<64x32xbf16>
    %c0_29 = arith.constant 0 : index
    %c0_30 = arith.constant 0 : index
    %37 = vector.load %arg13[%c0_29, %c0_30] : memref<1x32xf32, #tpu.memory_space<vmem>>, vector<1x32xf32>
    %c0_31 = arith.constant 0 : index
    %c0_32 = arith.constant 0 : index
    %38 = vector.load %arg14[%c0_31, %c0_32] : memref<1x32xf32, #tpu.memory_space<vmem>>, vector<1x32xf32>
    %c0_33 = arith.constant 0 : index
    %c0_34 = arith.constant 0 : index
    %39 = vector.load %arg15[%c0_33, %c0_34] : memref<1x32xf32, #tpu.memory_space<vmem>>, vector<1x32xf32>
    %40 = arith.truncf %27 : vector<16x32xf32> to vector<16x32xbf16>
    %cst_35 = arith.constant dense<0.000000e+00> : vector<16x96xf32>
    %41 = tpu.matmul %40, %28, %cst_35 {dimension_numbers = #tpu.dot_dimension_numbers<[1], [0], [0], [1], [0, 0, 1, 1], [], []>} : vector<16x32xbf16>, vector<32x96xbf16>, vector<16x96xf32> -> vector<16x96xf32>
    %42 = vector.broadcast %29 : vector<1x96xf32> to vector<16x96xf32>
    %43 = arith.addf %41, %42 : vector<16x96xf32>
    %44 = vector.extract_strided_slice %43 {offsets = [0, 0], sizes = [16, 32], strides = [1, 1]} : vector<16x96xf32> to vector<16x32xf32>
    %45 = vector.extract_strided_slice %43 {offsets = [0, 32], sizes = [16, 32], strides = [1, 1]} : vector<16x96xf32> to vector<16x32xf32>
    %46 = vector.extract_strided_slice %43 {offsets = [0, 64], sizes = [16, 32], strides = [1, 1]} : vector<16x96xf32> to vector<16x32xf32>
    %47 = vector.extract_strided_slice %0 {offsets = [0, 0], sizes = [1, 8], strides = [1, 1]} : vector<2x8xf32> to vector<1x8xf32>
    %48 = vector.extract_strided_slice %44 {offsets = [0, 0], sizes = [8, 16], strides = [1, 1]} : vector<16x32xf32> to vector<8x16xf32>
    %49 = arith.truncf %48 : vector<8x16xf32> to vector<8x16xbf16>
    %50 = vector.extract_strided_slice %45 {offsets = [0, 0], sizes = [8, 16], strides = [1, 1]} : vector<16x32xf32> to vector<8x16xf32>
    %51 = arith.truncf %50 : vector<8x16xf32> to vector<8x16xbf16>
    %52 = vector.extract_strided_slice %46 {offsets = [0, 0], sizes = [8, 16], strides = [1, 1]} : vector<16x32xf32> to vector<8x16xf32>
    %53 = arith.truncf %52 : vector<8x16xf32> to vector<8x16xbf16>
    %cst_36 = arith.constant dense<0.000000e+00> : vector<8x8xf32>
    %54 = tpu.matmul %49, %51, %cst_36 {dimension_numbers = #tpu.dot_dimension_numbers<[1], [1], [0], [0], [0, 0, 1, 0], [], []>} : vector<8x16xbf16>, vector<8x16xbf16>, vector<8x8xf32> -> vector<8x8xf32>
    %55 = vector.broadcast %47 : vector<1x8xf32> to vector<8x8xf32>
    %56 = arith.addf %54, %55 : vector<8x8xf32>
    %cst_37 = arith.constant dense<0xFF800000> : vector<8xf32>
    %57 = vector.multi_reduction <maximumf>, %56, %cst_37 [1] : vector<8x8xf32> to vector<8xf32>
    %58 = vector.shape_cast %57 : vector<8xf32> to vector<8x1xf32>
    %59 = vector.broadcast %58 : vector<8x1xf32> to vector<8x8xf32>
    %60 = arith.subf %56, %59 : vector<8x8xf32>
    %61 = math.exp %60 : vector<8x8xf32>
    %cst_38 = arith.constant dense<0.000000e+00> : vector<8xf32>
    %62 = vector.multi_reduction <add>, %61, %cst_38 [1] : vector<8x8xf32> to vector<8xf32>
    %63 = vector.shape_cast %62 : vector<8xf32> to vector<8x1xf32>
    %64 = tpu.reciprocal %63 {approx = true} : vector<8x1xf32> -> vector<8x1xf32>
    %65 = vector.broadcast %64 : vector<8x1xf32> to vector<8x8xf32>
    %66 = arith.mulf %61, %65 : vector<8x8xf32>
    %67 = arith.truncf %66 : vector<8x8xf32> to vector<8x8xbf16>
    %cst_39 = arith.constant dense<0.000000e+00> : vector<8x16xf32>
    %68 = tpu.matmul %67, %53, %cst_39 {dimension_numbers = #tpu.dot_dimension_numbers<[1], [0], [0], [1], [0, 0, 1, 1], [], []>} : vector<8x8xbf16>, vector<8x16xbf16>, vector<8x16xf32> -> vector<8x16xf32>
    %69 = vector.extract_strided_slice %44 {offsets = [0, 16], sizes = [8, 16], strides = [1, 1]} : vector<16x32xf32> to vector<8x16xf32>
    %70 = arith.truncf %69 : vector<8x16xf32> to vector<8x16xbf16>
    %71 = vector.extract_strided_slice %45 {offsets = [0, 16], sizes = [8, 16], strides = [1, 1]} : vector<16x32xf32> to vector<8x16xf32>
    %72 = arith.truncf %71 : vector<8x16xf32> to vector<8x16xbf16>
    %73 = vector.extract_strided_slice %46 {offsets = [0, 16], sizes = [8, 16], strides = [1, 1]} : vector<16x32xf32> to vector<8x16xf32>
    %74 = arith.truncf %73 : vector<8x16xf32> to vector<8x16xbf16>
    %cst_40 = arith.constant dense<0.000000e+00> : vector<8x8xf32>
    %75 = tpu.matmul %70, %72, %cst_40 {dimension_numbers = #tpu.dot_dimension_numbers<[1], [1], [0], [0], [0, 0, 1, 0], [], []>} : vector<8x16xbf16>, vector<8x16xbf16>, vector<8x8xf32> -> vector<8x8xf32>
    %76 = vector.broadcast %47 : vector<1x8xf32> to vector<8x8xf32>
    %77 = arith.addf %75, %76 : vector<8x8xf32>
    %cst_41 = arith.constant dense<0xFF800000> : vector<8xf32>
    %78 = vector.multi_reduction <maximumf>, %77, %cst_41 [1] : vector<8x8xf32> to vector<8xf32>
    %79 = vector.shape_cast %78 : vector<8xf32> to vector<8x1xf32>
    %80 = vector.broadcast %79 : vector<8x1xf32> to vector<8x8xf32>
    %81 = arith.subf %77, %80 : vector<8x8xf32>
    %82 = math.exp %81 : vector<8x8xf32>
    %cst_42 = arith.constant dense<0.000000e+00> : vector<8xf32>
    %83 = vector.multi_reduction <add>, %82, %cst_42 [1] : vector<8x8xf32> to vector<8xf32>
    %84 = vector.shape_cast %83 : vector<8xf32> to vector<8x1xf32>
    %85 = tpu.reciprocal %84 {approx = true} : vector<8x1xf32> -> vector<8x1xf32>
    %86 = vector.broadcast %85 : vector<8x1xf32> to vector<8x8xf32>
    %87 = arith.mulf %82, %86 : vector<8x8xf32>
    %88 = arith.truncf %87 : vector<8x8xf32> to vector<8x8xbf16>
    %cst_43 = arith.constant dense<0.000000e+00> : vector<8x16xf32>
    %89 = tpu.matmul %88, %74, %cst_43 {dimension_numbers = #tpu.dot_dimension_numbers<[1], [0], [0], [1], [0, 0, 1, 1], [], []>} : vector<8x8xbf16>, vector<8x16xbf16>, vector<8x16xf32> -> vector<8x16xf32>
    %90 = tpu.concatenate %68, %89 in 1 : vector<8x16xf32>, vector<8x16xf32> -> vector<8x32xf32>
    %91 = vector.extract_strided_slice %0 {offsets = [1, 0], sizes = [1, 8], strides = [1, 1]} : vector<2x8xf32> to vector<1x8xf32>
    %92 = vector.extract_strided_slice %44 {offsets = [8, 0], sizes = [8, 16], strides = [1, 1]} : vector<16x32xf32> to vector<8x16xf32>
    %93 = arith.truncf %92 : vector<8x16xf32> to vector<8x16xbf16>
    %94 = vector.extract_strided_slice %45 {offsets = [8, 0], sizes = [8, 16], strides = [1, 1]} : vector<16x32xf32> to vector<8x16xf32>
    %95 = arith.truncf %94 : vector<8x16xf32> to vector<8x16xbf16>
    %96 = vector.extract_strided_slice %46 {offsets = [8, 0], sizes = [8, 16], strides = [1, 1]} : vector<16x32xf32> to vector<8x16xf32>
    %97 = arith.truncf %96 : vector<8x16xf32> to vector<8x16xbf16>
    %cst_44 = arith.constant dense<0.000000e+00> : vector<8x8xf32>
    %98 = tpu.matmul %93, %95, %cst_44 {dimension_numbers = #tpu.dot_dimension_numbers<[1], [1], [0], [0], [0, 0, 1, 0], [], []>} : vector<8x16xbf16>, vector<8x16xbf16>, vector<8x8xf32> -> vector<8x8xf32>
    %99 = vector.broadcast %91 : vector<1x8xf32> to vector<8x8xf32>
    %100 = arith.addf %98, %99 : vector<8x8xf32>
    %cst_45 = arith.constant dense<0xFF800000> : vector<8xf32>
    %101 = vector.multi_reduction <maximumf>, %100, %cst_45 [1] : vector<8x8xf32> to vector<8xf32>
    %102 = vector.shape_cast %101 : vector<8xf32> to vector<8x1xf32>
    %103 = vector.broadcast %102 : vector<8x1xf32> to vector<8x8xf32>
    %104 = arith.subf %100, %103 : vector<8x8xf32>
    %105 = math.exp %104 : vector<8x8xf32>
    %cst_46 = arith.constant dense<0.000000e+00> : vector<8xf32>
    %106 = vector.multi_reduction <add>, %105, %cst_46 [1] : vector<8x8xf32> to vector<8xf32>
    %107 = vector.shape_cast %106 : vector<8xf32> to vector<8x1xf32>
    %108 = tpu.reciprocal %107 {approx = true} : vector<8x1xf32> -> vector<8x1xf32>
    %109 = vector.broadcast %108 : vector<8x1xf32> to vector<8x8xf32>
    %110 = arith.mulf %105, %109 : vector<8x8xf32>
    %111 = arith.truncf %110 : vector<8x8xf32> to vector<8x8xbf16>
    %cst_47 = arith.constant dense<0.000000e+00> : vector<8x16xf32>
    %112 = tpu.matmul %111, %97, %cst_47 {dimension_numbers = #tpu.dot_dimension_numbers<[1], [0], [0], [1], [0, 0, 1, 1], [], []>} : vector<8x8xbf16>, vector<8x16xbf16>, vector<8x16xf32> -> vector<8x16xf32>
    %113 = vector.extract_strided_slice %44 {offsets = [8, 16], sizes = [8, 16], strides = [1, 1]} : vector<16x32xf32> to vector<8x16xf32>
    %114 = arith.truncf %113 : vector<8x16xf32> to vector<8x16xbf16>
    %115 = vector.extract_strided_slice %45 {offsets = [8, 16], sizes = [8, 16], strides = [1, 1]} : vector<16x32xf32> to vector<8x16xf32>
    %116 = arith.truncf %115 : vector<8x16xf32> to vector<8x16xbf16>
    %117 = vector.extract_strided_slice %46 {offsets = [8, 16], sizes = [8, 16], strides = [1, 1]} : vector<16x32xf32> to vector<8x16xf32>
    %118 = arith.truncf %117 : vector<8x16xf32> to vector<8x16xbf16>
    %cst_48 = arith.constant dense<0.000000e+00> : vector<8x8xf32>
    %119 = tpu.matmul %114, %116, %cst_48 {dimension_numbers = #tpu.dot_dimension_numbers<[1], [1], [0], [0], [0, 0, 1, 0], [], []>} : vector<8x16xbf16>, vector<8x16xbf16>, vector<8x8xf32> -> vector<8x8xf32>
    %120 = vector.broadcast %91 : vector<1x8xf32> to vector<8x8xf32>
    %121 = arith.addf %119, %120 : vector<8x8xf32>
    %cst_49 = arith.constant dense<0xFF800000> : vector<8xf32>
    %122 = vector.multi_reduction <maximumf>, %121, %cst_49 [1] : vector<8x8xf32> to vector<8xf32>
    %123 = vector.shape_cast %122 : vector<8xf32> to vector<8x1xf32>
    %124 = vector.broadcast %123 : vector<8x1xf32> to vector<8x8xf32>
    %125 = arith.subf %121, %124 : vector<8x8xf32>
    %126 = math.exp %125 : vector<8x8xf32>
    %cst_50 = arith.constant dense<0.000000e+00> : vector<8xf32>
    %127 = vector.multi_reduction <add>, %126, %cst_50 [1] : vector<8x8xf32> to vector<8xf32>
    %128 = vector.shape_cast %127 : vector<8xf32> to vector<8x1xf32>
    %129 = tpu.reciprocal %128 {approx = true} : vector<8x1xf32> -> vector<8x1xf32>
    %130 = vector.broadcast %129 : vector<8x1xf32> to vector<8x8xf32>
    %131 = arith.mulf %126, %130 : vector<8x8xf32>
    %132 = arith.truncf %131 : vector<8x8xf32> to vector<8x8xbf16>
    %cst_51 = arith.constant dense<0.000000e+00> : vector<8x16xf32>
    %133 = tpu.matmul %132, %118, %cst_51 {dimension_numbers = #tpu.dot_dimension_numbers<[1], [0], [0], [1], [0, 0, 1, 1], [], []>} : vector<8x8xbf16>, vector<8x16xbf16>, vector<8x16xf32> -> vector<8x16xf32>
    %134 = tpu.concatenate %112, %133 in 1 : vector<8x16xf32>, vector<8x16xf32> -> vector<8x32xf32>
    %135 = tpu.concatenate %90, %134 in 0 : vector<8x32xf32>, vector<8x32xf32> -> vector<16x32xf32>
    %136 = arith.truncf %135 : vector<16x32xf32> to vector<16x32xbf16>
    %cst_52 = arith.constant dense<0.000000e+00> : vector<16x32xf32>
    %137 = tpu.matmul %136, %30, %cst_52 {dimension_numbers = #tpu.dot_dimension_numbers<[1], [0], [0], [1], [0, 0, 1, 1], [], []>} : vector<16x32xbf16>, vector<32x32xbf16>, vector<16x32xf32> -> vector<16x32xf32>
    %138 = vector.broadcast %31 : vector<1x32xf32> to vector<16x32xf32>
    %139 = arith.addf %137, %138 : vector<16x32xf32>
    %140 = arith.addf %139, %27 : vector<16x32xf32>
    %cst_53 = arith.constant dense<0.000000e+00> : vector<16xf32>
    %141 = vector.multi_reduction <add>, %140, %cst_53 [1] : vector<16x32xf32> to vector<16xf32>
    %142 = vector.shape_cast %141 : vector<16xf32> to vector<16x1xf32>
    %cst_54 = arith.constant 3.200000e+01 : f32
    %143 = vector.broadcast %cst_54 : f32 to vector<16x1xf32>
    %144 = arith.divf %142, %143 : vector<16x1xf32>
    %145 = vector.broadcast %144 : vector<16x1xf32> to vector<16x32xf32>
    %146 = arith.subf %140, %145 : vector<16x32xf32>
    %147 = vector.broadcast %144 : vector<16x1xf32> to vector<16x32xf32>
    %148 = arith.subf %140, %147 : vector<16x32xf32>
    %149 = arith.mulf %146, %148 : vector<16x32xf32>
    %cst_55 = arith.constant dense<0.000000e+00> : vector<16xf32>
    %150 = vector.multi_reduction <add>, %149, %cst_55 [1] : vector<16x32xf32> to vector<16xf32>
    %151 = vector.shape_cast %150 : vector<16xf32> to vector<16x1xf32>
    %cst_56 = arith.constant 3.200000e+01 : f32
    %152 = vector.broadcast %cst_56 : f32 to vector<16x1xf32>
    %153 = arith.divf %151, %152 : vector<16x1xf32>
    %154 = vector.broadcast %144 : vector<16x1xf32> to vector<16x32xf32>
    %155 = arith.subf %140, %154 : vector<16x32xf32>
    %cst_57 = arith.constant 9.99999996E-13 : f32
    %156 = vector.broadcast %cst_57 : f32 to vector<16x1xf32>
    %157 = arith.addf %153, %156 : vector<16x1xf32>
    %158 = math.rsqrt %157 : vector<16x1xf32>
    %159 = vector.broadcast %158 : vector<16x1xf32> to vector<16x32xf32>
    %160 = arith.mulf %155, %159 : vector<16x32xf32>
    %161 = vector.broadcast %32 : vector<1x32xf32> to vector<16x32xf32>
    %162 = arith.mulf %160, %161 : vector<16x32xf32>
    %163 = vector.broadcast %33 : vector<1x32xf32> to vector<16x32xf32>
    %164 = arith.addf %162, %163 : vector<16x32xf32>
    %165 = arith.truncf %164 : vector<16x32xf32> to vector<16x32xbf16>
    %cst_58 = arith.constant dense<0.000000e+00> : vector<16x64xf32>
    %166 = tpu.matmul %165, %34, %cst_58 {dimension_numbers = #tpu.dot_dimension_numbers<[1], [0], [0], [1], [0, 0, 1, 1], [], []>} : vector<16x32xbf16>, vector<32x64xbf16>, vector<16x64xf32> -> vector<16x64xf32>
    %167 = vector.broadcast %35 : vector<1x64xf32> to vector<16x64xf32>
    %168 = arith.addf %166, %167 : vector<16x64xf32>
    %cst_59 = arith.constant 5.000000e-01 : f32
    %169 = vector.broadcast %cst_59 : f32 to vector<16x64xf32>
    %170 = arith.mulf %169, %168 : vector<16x64xf32>
    %cst_60 = arith.constant 4.471500e-02 : f32
    %171 = vector.broadcast %cst_60 : f32 to vector<16x64xf32>
    %172 = arith.mulf %171, %168 : vector<16x64xf32>
    %173 = arith.mulf %172, %168 : vector<16x64xf32>
    %174 = arith.mulf %173, %168 : vector<16x64xf32>
    %175 = arith.addf %168, %174 : vector<16x64xf32>
    %cst_61 = arith.constant 0.797884583 : f32
    %176 = vector.broadcast %cst_61 : f32 to vector<16x64xf32>
    %177 = arith.mulf %176, %175 : vector<16x64xf32>
    %178 = math.tanh %177 : vector<16x64xf32>
    %cst_62 = arith.constant 1.000000e+00 : f32
    %179 = vector.broadcast %cst_62 : f32 to vector<16x64xf32>
    %180 = arith.addf %179, %178 : vector<16x64xf32>
    %181 = arith.mulf %170, %180 : vector<16x64xf32>
    %182 = arith.truncf %181 : vector<16x64xf32> to vector<16x64xbf16>
    %cst_63 = arith.constant dense<0.000000e+00> : vector<16x32xf32>
    %183 = tpu.matmul %182, %36, %cst_63 {dimension_numbers = #tpu.dot_dimension_numbers<[1], [0], [0], [1], [0, 0, 1, 1], [], []>} : vector<16x64xbf16>, vector<64x32xbf16>, vector<16x32xf32> -> vector<16x32xf32>
    %184 = vector.broadcast %37 : vector<1x32xf32> to vector<16x32xf32>
    %185 = arith.addf %183, %184 : vector<16x32xf32>
    %186 = arith.addf %185, %164 : vector<16x32xf32>
    %cst_64 = arith.constant dense<0.000000e+00> : vector<16xf32>
    %187 = vector.multi_reduction <add>, %186, %cst_64 [1] : vector<16x32xf32> to vector<16xf32>
    %188 = vector.shape_cast %187 : vector<16xf32> to vector<16x1xf32>
    %cst_65 = arith.constant 3.200000e+01 : f32
    %189 = vector.broadcast %cst_65 : f32 to vector<16x1xf32>
    %190 = arith.divf %188, %189 : vector<16x1xf32>
    %191 = vector.broadcast %190 : vector<16x1xf32> to vector<16x32xf32>
    %192 = arith.subf %186, %191 : vector<16x32xf32>
    %193 = vector.broadcast %190 : vector<16x1xf32> to vector<16x32xf32>
    %194 = arith.subf %186, %193 : vector<16x32xf32>
    %195 = arith.mulf %192, %194 : vector<16x32xf32>
    %cst_66 = arith.constant dense<0.000000e+00> : vector<16xf32>
    %196 = vector.multi_reduction <add>, %195, %cst_66 [1] : vector<16x32xf32> to vector<16xf32>
    %197 = vector.shape_cast %196 : vector<16xf32> to vector<16x1xf32>
    %cst_67 = arith.constant 3.200000e+01 : f32
    %198 = vector.broadcast %cst_67 : f32 to vector<16x1xf32>
    %199 = arith.divf %197, %198 : vector<16x1xf32>
    %200 = vector.broadcast %190 : vector<16x1xf32> to vector<16x32xf32>
    %201 = arith.subf %186, %200 : vector<16x32xf32>
    %cst_68 = arith.constant 9.99999996E-13 : f32
    %202 = vector.broadcast %cst_68 : f32 to vector<16x1xf32>
    %203 = arith.addf %199, %202 : vector<16x1xf32>
    %204 = math.rsqrt %203 : vector<16x1xf32>
    %205 = vector.broadcast %204 : vector<16x1xf32> to vector<16x32xf32>
    %206 = arith.mulf %201, %205 : vector<16x32xf32>
    %207 = vector.broadcast %38 : vector<1x32xf32> to vector<16x32xf32>
    %208 = arith.mulf %206, %207 : vector<16x32xf32>
    %209 = vector.broadcast %39 : vector<1x32xf32> to vector<16x32xf32>
    %210 = arith.addf %208, %209 : vector<16x32xf32>
    %c0_69 = arith.constant 0 : index
    %c0_70 = arith.constant 0 : index
    %211 = vector.load %arg16[%c0_69, %c0_70] : memref<32x96xbf16, #tpu.memory_space<vmem>>, vector<32x96xbf16>
    %c0_71 = arith.constant 0 : index
    %c0_72 = arith.constant 0 : index
    %212 = vector.load %arg17[%c0_71, %c0_72] : memref<1x96xf32, #tpu.memory_space<vmem>>, vector<1x96xf32>
    %c0_73 = arith.constant 0 : index
    %c0_74 = arith.constant 0 : index
    %213 = vector.load %arg18[%c0_73, %c0_74] : memref<32x32xbf16, #tpu.memory_space<vmem>>, vector<32x32xbf16>
    %c0_75 = arith.constant 0 : index
    %c0_76 = arith.constant 0 : index
    %214 = vector.load %arg19[%c0_75, %c0_76] : memref<1x32xf32, #tpu.memory_space<vmem>>, vector<1x32xf32>
    %c0_77 = arith.constant 0 : index
    %c0_78 = arith.constant 0 : index
    %215 = vector.load %arg20[%c0_77, %c0_78] : memref<1x32xf32, #tpu.memory_space<vmem>>, vector<1x32xf32>
    %c0_79 = arith.constant 0 : index
    %c0_80 = arith.constant 0 : index
    %216 = vector.load %arg21[%c0_79, %c0_80] : memref<1x32xf32, #tpu.memory_space<vmem>>, vector<1x32xf32>
    %c0_81 = arith.constant 0 : index
    %c0_82 = arith.constant 0 : index
    %217 = vector.load %arg22[%c0_81, %c0_82] : memref<32x64xbf16, #tpu.memory_space<vmem>>, vector<32x64xbf16>
    %c0_83 = arith.constant 0 : index
    %c0_84 = arith.constant 0 : index
    %218 = vector.load %arg23[%c0_83, %c0_84] : memref<1x64xf32, #tpu.memory_space<vmem>>, vector<1x64xf32>
    %c0_85 = arith.constant 0 : index
    %c0_86 = arith.constant 0 : index
    %219 = vector.load %arg24[%c0_85, %c0_86] : memref<64x32xbf16, #tpu.memory_space<vmem>>, vector<64x32xbf16>
    %c0_87 = arith.constant 0 : index
    %c0_88 = arith.constant 0 : index
    %220 = vector.load %arg25[%c0_87, %c0_88] : memref<1x32xf32, #tpu.memory_space<vmem>>, vector<1x32xf32>
    %c0_89 = arith.constant 0 : index
    %c0_90 = arith.constant 0 : index
    %221 = vector.load %arg26[%c0_89, %c0_90] : memref<1x32xf32, #tpu.memory_space<vmem>>, vector<1x32xf32>
    %c0_91 = arith.constant 0 : index
    %c0_92 = arith.constant 0 : index
    %222 = vector.load %arg27[%c0_91, %c0_92] : memref<1x32xf32, #tpu.memory_space<vmem>>, vector<1x32xf32>
    %223 = arith.truncf %210 : vector<16x32xf32> to vector<16x32xbf16>
    %cst_93 = arith.constant dense<0.000000e+00> : vector<16x96xf32>
    %224 = tpu.matmul %223, %211, %cst_93 {dimension_numbers = #tpu.dot_dimension_numbers<[1], [0], [0], [1], [0, 0, 1, 1], [], []>} : vector<16x32xbf16>, vector<32x96xbf16>, vector<16x96xf32> -> vector<16x96xf32>
    %225 = vector.broadcast %212 : vector<1x96xf32> to vector<16x96xf32>
    %226 = arith.addf %224, %225 : vector<16x96xf32>
    %227 = vector.extract_strided_slice %226 {offsets = [0, 0], sizes = [16, 32], strides = [1, 1]} : vector<16x96xf32> to vector<16x32xf32>
    %228 = vector.extract_strided_slice %226 {offsets = [0, 32], sizes = [16, 32], strides = [1, 1]} : vector<16x96xf32> to vector<16x32xf32>
    %229 = vector.extract_strided_slice %226 {offsets = [0, 64], sizes = [16, 32], strides = [1, 1]} : vector<16x96xf32> to vector<16x32xf32>
    %230 = vector.extract_strided_slice %0 {offsets = [0, 0], sizes = [1, 8], strides = [1, 1]} : vector<2x8xf32> to vector<1x8xf32>
    %231 = vector.extract_strided_slice %227 {offsets = [0, 0], sizes = [8, 16], strides = [1, 1]} : vector<16x32xf32> to vector<8x16xf32>
    %232 = arith.truncf %231 : vector<8x16xf32> to vector<8x16xbf16>
    %233 = vector.extract_strided_slice %228 {offsets = [0, 0], sizes = [8, 16], strides = [1, 1]} : vector<16x32xf32> to vector<8x16xf32>
    %234 = arith.truncf %233 : vector<8x16xf32> to vector<8x16xbf16>
    %235 = vector.extract_strided_slice %229 {offsets = [0, 0], sizes = [8, 16], strides = [1, 1]} : vector<16x32xf32> to vector<8x16xf32>
    %236 = arith.truncf %235 : vector<8x16xf32> to vector<8x16xbf16>
    %cst_94 = arith.constant dense<0.000000e+00> : vector<8x8xf32>
    %237 = tpu.matmul %232, %234, %cst_94 {dimension_numbers = #tpu.dot_dimension_numbers<[1], [1], [0], [0], [0, 0, 1, 0], [], []>} : vector<8x16xbf16>, vector<8x16xbf16>, vector<8x8xf32> -> vector<8x8xf32>
    %238 = vector.broadcast %230 : vector<1x8xf32> to vector<8x8xf32>
    %239 = arith.addf %237, %238 : vector<8x8xf32>
    %cst_95 = arith.constant dense<0xFF800000> : vector<8xf32>
    %240 = vector.multi_reduction <maximumf>, %239, %cst_95 [1] : vector<8x8xf32> to vector<8xf32>
    %241 = vector.shape_cast %240 : vector<8xf32> to vector<8x1xf32>
    %242 = vector.broadcast %241 : vector<8x1xf32> to vector<8x8xf32>
    %243 = arith.subf %239, %242 : vector<8x8xf32>
    %244 = math.exp %243 : vector<8x8xf32>
    %cst_96 = arith.constant dense<0.000000e+00> : vector<8xf32>
    %245 = vector.multi_reduction <add>, %244, %cst_96 [1] : vector<8x8xf32> to vector<8xf32>
    %246 = vector.shape_cast %245 : vector<8xf32> to vector<8x1xf32>
    %247 = tpu.reciprocal %246 {approx = true} : vector<8x1xf32> -> vector<8x1xf32>
    %248 = vector.broadcast %247 : vector<8x1xf32> to vector<8x8xf32>
    %249 = arith.mulf %244, %248 : vector<8x8xf32>
    %250 = arith.truncf %249 : vector<8x8xf32> to vector<8x8xbf16>
    %cst_97 = arith.constant dense<0.000000e+00> : vector<8x16xf32>
    %251 = tpu.matmul %250, %236, %cst_97 {dimension_numbers = #tpu.dot_dimension_numbers<[1], [0], [0], [1], [0, 0, 1, 1], [], []>} : vector<8x8xbf16>, vector<8x16xbf16>, vector<8x16xf32> -> vector<8x16xf32>
    %252 = vector.extract_strided_slice %227 {offsets = [0, 16], sizes = [8, 16], strides = [1, 1]} : vector<16x32xf32> to vector<8x16xf32>
    %253 = arith.truncf %252 : vector<8x16xf32> to vector<8x16xbf16>
    %254 = vector.extract_strided_slice %228 {offsets = [0, 16], sizes = [8, 16], strides = [1, 1]} : vector<16x32xf32> to vector<8x16xf32>
    %255 = arith.truncf %254 : vector<8x16xf32> to vector<8x16xbf16>
    %256 = vector.extract_strided_slice %229 {offsets = [0, 16], sizes = [8, 16], strides = [1, 1]} : vector<16x32xf32> to vector<8x16xf32>
    %257 = arith.truncf %256 : vector<8x16xf32> to vector<8x16xbf16>
    %cst_98 = arith.constant dense<0.000000e+00> : vector<8x8xf32>
    %258 = tpu.matmul %253, %255, %cst_98 {dimension_numbers = #tpu.dot_dimension_numbers<[1], [1], [0], [0], [0, 0, 1, 0], [], []>} : vector<8x16xbf16>, vector<8x16xbf16>, vector<8x8xf32> -> vector<8x8xf32>
    %259 = vector.broadcast %230 : vector<1x8xf32> to vector<8x8xf32>
    %260 = arith.addf %258, %259 : vector<8x8xf32>
    %cst_99 = arith.constant dense<0xFF800000> : vector<8xf32>
    %261 = vector.multi_reduction <maximumf>, %260, %cst_99 [1] : vector<8x8xf32> to vector<8xf32>
    %262 = vector.shape_cast %261 : vector<8xf32> to vector<8x1xf32>
    %263 = vector.broadcast %262 : vector<8x1xf32> to vector<8x8xf32>
    %264 = arith.subf %260, %263 : vector<8x8xf32>
    %265 = math.exp %264 : vector<8x8xf32>
    %cst_100 = arith.constant dense<0.000000e+00> : vector<8xf32>
    %266 = vector.multi_reduction <add>, %265, %cst_100 [1] : vector<8x8xf32> to vector<8xf32>
    %267 = vector.shape_cast %266 : vector<8xf32> to vector<8x1xf32>
    %268 = tpu.reciprocal %267 {approx = true} : vector<8x1xf32> -> vector<8x1xf32>
    %269 = vector.broadcast %268 : vector<8x1xf32> to vector<8x8xf32>
    %270 = arith.mulf %265, %269 : vector<8x8xf32>
    %271 = arith.truncf %270 : vector<8x8xf32> to vector<8x8xbf16>
    %cst_101 = arith.constant dense<0.000000e+00> : vector<8x16xf32>
    %272 = tpu.matmul %271, %257, %cst_101 {dimension_numbers = #tpu.dot_dimension_numbers<[1], [0], [0], [1], [0, 0, 1, 1], [], []>} : vector<8x8xbf16>, vector<8x16xbf16>, vector<8x16xf32> -> vector<8x16xf32>
    %273 = tpu.concatenate %251, %272 in 1 : vector<8x16xf32>, vector<8x16xf32> -> vector<8x32xf32>
    %274 = vector.extract_strided_slice %0 {offsets = [1, 0], sizes = [1, 8], strides = [1, 1]} : vector<2x8xf32> to vector<1x8xf32>
    %275 = vector.extract_strided_slice %227 {offsets = [8, 0], sizes = [8, 16], strides = [1, 1]} : vector<16x32xf32> to vector<8x16xf32>
    %276 = arith.truncf %275 : vector<8x16xf32> to vector<8x16xbf16>
    %277 = vector.extract_strided_slice %228 {offsets = [8, 0], sizes = [8, 16], strides = [1, 1]} : vector<16x32xf32> to vector<8x16xf32>
    %278 = arith.truncf %277 : vector<8x16xf32> to vector<8x16xbf16>
    %279 = vector.extract_strided_slice %229 {offsets = [8, 0], sizes = [8, 16], strides = [1, 1]} : vector<16x32xf32> to vector<8x16xf32>
    %280 = arith.truncf %279 : vector<8x16xf32> to vector<8x16xbf16>
    %cst_102 = arith.constant dense<0.000000e+00> : vector<8x8xf32>
    %281 = tpu.matmul %276, %278, %cst_102 {dimension_numbers = #tpu.dot_dimension_numbers<[1], [1], [0], [0], [0, 0, 1, 0], [], []>} : vector<8x16xbf16>, vector<8x16xbf16>, vector<8x8xf32> -> vector<8x8xf32>
    %282 = vector.broadcast %274 : vector<1x8xf32> to vector<8x8xf32>
    %283 = arith.addf %281, %282 : vector<8x8xf32>
    %cst_103 = arith.constant dense<0xFF800000> : vector<8xf32>
    %284 = vector.multi_reduction <maximumf>, %283, %cst_103 [1] : vector<8x8xf32> to vector<8xf32>
    %285 = vector.shape_cast %284 : vector<8xf32> to vector<8x1xf32>
    %286 = vector.broadcast %285 : vector<8x1xf32> to vector<8x8xf32>
    %287 = arith.subf %283, %286 : vector<8x8xf32>
    %288 = math.exp %287 : vector<8x8xf32>
    %cst_104 = arith.constant dense<0.000000e+00> : vector<8xf32>
    %289 = vector.multi_reduction <add>, %288, %cst_104 [1] : vector<8x8xf32> to vector<8xf32>
    %290 = vector.shape_cast %289 : vector<8xf32> to vector<8x1xf32>
    %291 = tpu.reciprocal %290 {approx = true} : vector<8x1xf32> -> vector<8x1xf32>
    %292 = vector.broadcast %291 : vector<8x1xf32> to vector<8x8xf32>
    %293 = arith.mulf %288, %292 : vector<8x8xf32>
    %294 = arith.truncf %293 : vector<8x8xf32> to vector<8x8xbf16>
    %cst_105 = arith.constant dense<0.000000e+00> : vector<8x16xf32>
    %295 = tpu.matmul %294, %280, %cst_105 {dimension_numbers = #tpu.dot_dimension_numbers<[1], [0], [0], [1], [0, 0, 1, 1], [], []>} : vector<8x8xbf16>, vector<8x16xbf16>, vector<8x16xf32> -> vector<8x16xf32>
    %296 = vector.extract_strided_slice %227 {offsets = [8, 16], sizes = [8, 16], strides = [1, 1]} : vector<16x32xf32> to vector<8x16xf32>
    %297 = arith.truncf %296 : vector<8x16xf32> to vector<8x16xbf16>
    %298 = vector.extract_strided_slice %228 {offsets = [8, 16], sizes = [8, 16], strides = [1, 1]} : vector<16x32xf32> to vector<8x16xf32>
    %299 = arith.truncf %298 : vector<8x16xf32> to vector<8x16xbf16>
    %300 = vector.extract_strided_slice %229 {offsets = [8, 16], sizes = [8, 16], strides = [1, 1]} : vector<16x32xf32> to vector<8x16xf32>
    %301 = arith.truncf %300 : vector<8x16xf32> to vector<8x16xbf16>
    %cst_106 = arith.constant dense<0.000000e+00> : vector<8x8xf32>
    %302 = tpu.matmul %297, %299, %cst_106 {dimension_numbers = #tpu.dot_dimension_numbers<[1], [1], [0], [0], [0, 0, 1, 0], [], []>} : vector<8x16xbf16>, vector<8x16xbf16>, vector<8x8xf32> -> vector<8x8xf32>
    %303 = vector.broadcast %274 : vector<1x8xf32> to vector<8x8xf32>
    %304 = arith.addf %302, %303 : vector<8x8xf32>
    %cst_107 = arith.constant dense<0xFF800000> : vector<8xf32>
    %305 = vector.multi_reduction <maximumf>, %304, %cst_107 [1] : vector<8x8xf32> to vector<8xf32>
    %306 = vector.shape_cast %305 : vector<8xf32> to vector<8x1xf32>
    %307 = vector.broadcast %306 : vector<8x1xf32> to vector<8x8xf32>
    %308 = arith.subf %304, %307 : vector<8x8xf32>
    %309 = math.exp %308 : vector<8x8xf32>
    %cst_108 = arith.constant dense<0.000000e+00> : vector<8xf32>
    %310 = vector.multi_reduction <add>, %309, %cst_108 [1] : vector<8x8xf32> to vector<8xf32>
    %311 = vector.shape_cast %310 : vector<8xf32> to vector<8x1xf32>
    %312 = tpu.reciprocal %311 {approx = true} : vector<8x1xf32> -> vector<8x1xf32>
    %313 = vector.broadcast %312 : vector<8x1xf32> to vector<8x8xf32>
    %314 = arith.mulf %309, %313 : vector<8x8xf32>
    %315 = arith.truncf %314 : vector<8x8xf32> to vector<8x8xbf16>
    %cst_109 = arith.constant dense<0.000000e+00> : vector<8x16xf32>
    %316 = tpu.matmul %315, %301, %cst_109 {dimension_numbers = #tpu.dot_dimension_numbers<[1], [0], [0], [1], [0, 0, 1, 1], [], []>} : vector<8x8xbf16>, vector<8x16xbf16>, vector<8x16xf32> -> vector<8x16xf32>
    %317 = tpu.concatenate %295, %316 in 1 : vector<8x16xf32>, vector<8x16xf32> -> vector<8x32xf32>
    %318 = tpu.concatenate %273, %317 in 0 : vector<8x32xf32>, vector<8x32xf32> -> vector<16x32xf32>
    %319 = arith.truncf %318 : vector<16x32xf32> to vector<16x32xbf16>
    %cst_110 = arith.constant dense<0.000000e+00> : vector<16x32xf32>
    %320 = tpu.matmul %319, %213, %cst_110 {dimension_numbers = #tpu.dot_dimension_numbers<[1], [0], [0], [1], [0, 0, 1, 1], [], []>} : vector<16x32xbf16>, vector<32x32xbf16>, vector<16x32xf32> -> vector<16x32xf32>
    %321 = vector.broadcast %214 : vector<1x32xf32> to vector<16x32xf32>
    %322 = arith.addf %320, %321 : vector<16x32xf32>
    %323 = arith.addf %322, %210 : vector<16x32xf32>
    %cst_111 = arith.constant dense<0.000000e+00> : vector<16xf32>
    %324 = vector.multi_reduction <add>, %323, %cst_111 [1] : vector<16x32xf32> to vector<16xf32>
    %325 = vector.shape_cast %324 : vector<16xf32> to vector<16x1xf32>
    %cst_112 = arith.constant 3.200000e+01 : f32
    %326 = vector.broadcast %cst_112 : f32 to vector<16x1xf32>
    %327 = arith.divf %325, %326 : vector<16x1xf32>
    %328 = vector.broadcast %327 : vector<16x1xf32> to vector<16x32xf32>
    %329 = arith.subf %323, %328 : vector<16x32xf32>
    %330 = vector.broadcast %327 : vector<16x1xf32> to vector<16x32xf32>
    %331 = arith.subf %323, %330 : vector<16x32xf32>
    %332 = arith.mulf %329, %331 : vector<16x32xf32>
    %cst_113 = arith.constant dense<0.000000e+00> : vector<16xf32>
    %333 = vector.multi_reduction <add>, %332, %cst_113 [1] : vector<16x32xf32> to vector<16xf32>
    %334 = vector.shape_cast %333 : vector<16xf32> to vector<16x1xf32>
    %cst_114 = arith.constant 3.200000e+01 : f32
    %335 = vector.broadcast %cst_114 : f32 to vector<16x1xf32>
    %336 = arith.divf %334, %335 : vector<16x1xf32>
    %337 = vector.broadcast %327 : vector<16x1xf32> to vector<16x32xf32>
    %338 = arith.subf %323, %337 : vector<16x32xf32>
    %cst_115 = arith.constant 9.99999996E-13 : f32
    %339 = vector.broadcast %cst_115 : f32 to vector<16x1xf32>
    %340 = arith.addf %336, %339 : vector<16x1xf32>
    %341 = math.rsqrt %340 : vector<16x1xf32>
    %342 = vector.broadcast %341 : vector<16x1xf32> to vector<16x32xf32>
    %343 = arith.mulf %338, %342 : vector<16x32xf32>
    %344 = vector.broadcast %215 : vector<1x32xf32> to vector<16x32xf32>
    %345 = arith.mulf %343, %344 : vector<16x32xf32>
    %346 = vector.broadcast %216 : vector<1x32xf32> to vector<16x32xf32>
    %347 = arith.addf %345, %346 : vector<16x32xf32>
    %348 = arith.truncf %347 : vector<16x32xf32> to vector<16x32xbf16>
    %cst_116 = arith.constant dense<0.000000e+00> : vector<16x64xf32>
    %349 = tpu.matmul %348, %217, %cst_116 {dimension_numbers = #tpu.dot_dimension_numbers<[1], [0], [0], [1], [0, 0, 1, 1], [], []>} : vector<16x32xbf16>, vector<32x64xbf16>, vector<16x64xf32> -> vector<16x64xf32>
    %350 = vector.broadcast %218 : vector<1x64xf32> to vector<16x64xf32>
    %351 = arith.addf %349, %350 : vector<16x64xf32>
    %cst_117 = arith.constant 5.000000e-01 : f32
    %352 = vector.broadcast %cst_117 : f32 to vector<16x64xf32>
    %353 = arith.mulf %352, %351 : vector<16x64xf32>
    %cst_118 = arith.constant 4.471500e-02 : f32
    %354 = vector.broadcast %cst_118 : f32 to vector<16x64xf32>
    %355 = arith.mulf %354, %351 : vector<16x64xf32>
    %356 = arith.mulf %355, %351 : vector<16x64xf32>
    %357 = arith.mulf %356, %351 : vector<16x64xf32>
    %358 = arith.addf %351, %357 : vector<16x64xf32>
    %cst_119 = arith.constant 0.797884583 : f32
    %359 = vector.broadcast %cst_119 : f32 to vector<16x64xf32>
    %360 = arith.mulf %359, %358 : vector<16x64xf32>
    %361 = math.tanh %360 : vector<16x64xf32>
    %cst_120 = arith.constant 1.000000e+00 : f32
    %362 = vector.broadcast %cst_120 : f32 to vector<16x64xf32>
    %363 = arith.addf %362, %361 : vector<16x64xf32>
    %364 = arith.mulf %353, %363 : vector<16x64xf32>
    %365 = arith.truncf %364 : vector<16x64xf32> to vector<16x64xbf16>
    %cst_121 = arith.constant dense<0.000000e+00> : vector<16x32xf32>
    %366 = tpu.matmul %365, %219, %cst_121 {dimension_numbers = #tpu.dot_dimension_numbers<[1], [0], [0], [1], [0, 0, 1, 1], [], []>} : vector<16x64xbf16>, vector<64x32xbf16>, vector<16x32xf32> -> vector<16x32xf32>
    %367 = vector.broadcast %220 : vector<1x32xf32> to vector<16x32xf32>
    %368 = arith.addf %366, %367 : vector<16x32xf32>
    %369 = arith.addf %368, %347 : vector<16x32xf32>
    %cst_122 = arith.constant dense<0.000000e+00> : vector<16xf32>
    %370 = vector.multi_reduction <add>, %369, %cst_122 [1] : vector<16x32xf32> to vector<16xf32>
    %371 = vector.shape_cast %370 : vector<16xf32> to vector<16x1xf32>
    %cst_123 = arith.constant 3.200000e+01 : f32
    %372 = vector.broadcast %cst_123 : f32 to vector<16x1xf32>
    %373 = arith.divf %371, %372 : vector<16x1xf32>
    %374 = vector.broadcast %373 : vector<16x1xf32> to vector<16x32xf32>
    %375 = arith.subf %369, %374 : vector<16x32xf32>
    %376 = vector.broadcast %373 : vector<16x1xf32> to vector<16x32xf32>
    %377 = arith.subf %369, %376 : vector<16x32xf32>
    %378 = arith.mulf %375, %377 : vector<16x32xf32>
    %cst_124 = arith.constant dense<0.000000e+00> : vector<16xf32>
    %379 = vector.multi_reduction <add>, %378, %cst_124 [1] : vector<16x32xf32> to vector<16xf32>
    %380 = vector.shape_cast %379 : vector<16xf32> to vector<16x1xf32>
    %cst_125 = arith.constant 3.200000e+01 : f32
    %381 = vector.broadcast %cst_125 : f32 to vector<16x1xf32>
    %382 = arith.divf %380, %381 : vector<16x1xf32>
    %383 = vector.broadcast %373 : vector<16x1xf32> to vector<16x32xf32>
    %384 = arith.subf %369, %383 : vector<16x32xf32>
    %cst_126 = arith.constant 9.99999996E-13 : f32
    %385 = vector.broadcast %cst_126 : f32 to vector<16x1xf32>
    %386 = arith.addf %382, %385 : vector<16x1xf32>
    %387 = math.rsqrt %386 : vector<16x1xf32>
    %388 = vector.broadcast %387 : vector<16x1xf32> to vector<16x32xf32>
    %389 = arith.mulf %384, %388 : vector<16x32xf32>
    %390 = vector.broadcast %221 : vector<1x32xf32> to vector<16x32xf32>
    %391 = arith.mulf %389, %390 : vector<16x32xf32>
    %392 = vector.broadcast %222 : vector<1x32xf32> to vector<16x32xf32>
    %393 = arith.addf %391, %392 : vector<16x32xf32>
    %394 = arith.truncf %393 : vector<16x32xf32> to vector<16x32xbf16>
    %c0_127 = arith.constant 0 : index
    %c0_128 = arith.constant 0 : index
    %395 = vector.load %arg28[%c0_127, %c0_128] : memref<32x128xbf16, #tpu.memory_space<vmem>>, vector<32x128xbf16>
    %cst_129 = arith.constant dense<0.000000e+00> : vector<16x128xf32>
    %396 = tpu.matmul %394, %395, %cst_129 {dimension_numbers = #tpu.dot_dimension_numbers<[1], [0], [0], [1], [0, 0, 1, 1], [], []>} : vector<16x32xbf16>, vector<32x128xbf16>, vector<16x128xf32> -> vector<16x128xf32>
    %c0_130 = arith.constant 0 : index
    %c0_131 = arith.constant 0 : index
    %397 = vector.load %arg29[%c0_130, %c0_131] : memref<1x128xf32, #tpu.memory_space<vmem>>, vector<1x128xf32>
    %398 = vector.broadcast %397 : vector<1x128xf32> to vector<16x128xf32>
    %399 = arith.addf %396, %398 : vector<16x128xf32>
    %c0_132 = arith.constant 0 : index
    %c0_133 = arith.constant 0 : index
    %400 = vector.load %arg30[%c0_132, %c0_133] : memref<16x128xf32, #tpu.memory_space<vmem>>, vector<16x128xf32>
    tpu.vector_store %arg30[%c0_132, %c0_133], %399 {strides = array<i32>} : memref<16x128xf32, #tpu.memory_space<vmem>>, vector<16x128xf32>,
    return
  }
}

</mosaic_0001>

<llo_original>
// kernel: bert_ner_forward.1
$region0: #{bert_ner_forward.1}
  #allocation0 [shape = 'u32[]', space=smem, size = 0x4, offset = 0x4, fixed_abs, tag = 'smem constant byte address 0x4 - core index']
  #allocation1 [shape = 'u32[144,128]{1,0:T(1,128)}', space=vmem, size = 0x12000, scoped, tag = 'internal scratch']
  %s0 = inlined_call_operand.smem [shape: u32[31], index: -1, kind: input, shape index: {}]
  %s1 = sld [smem:[%s0]]
  %s2 = scalar_lea.smem %s0, 1
  %s3 = sld [smem:[%s2]]
  %s4 = scalar_lea.smem %s0, 2
  %s5 = sld [smem:[%s4]]
  %s6 = scalar_lea.smem %s0, 3
  %s7 = sld [smem:[%s6]]
  %s8 = scalar_lea.smem %s0, 4
  %s9 = sld [smem:[%s8]]
  %s10 = scalar_lea.smem %s0, 5
  %s11 = sld [smem:[%s10]]
  %s12 = scalar_lea.smem %s0, 6
  %s13 = sld [smem:[%s12]]
  %s14 = scalar_lea.smem %s0, 7
  %s15 = sld [smem:[%s14]]
  %s16 = scalar_lea.smem %s0, 8
  %s17 = sld [smem:[%s16]]
  %s18 = scalar_lea.smem %s0, 9
  %s19 = sld [smem:[%s18]]
  %s20 = scalar_lea.smem %s0, 10
  %s21 = sld [smem:[%s20]]
  %s22 = scalar_lea.smem %s0, 11
  %s23 = sld [smem:[%s22]]
  %s24 = scalar_lea.smem %s0, 12
  %s25 = sld [smem:[%s24]]
  %s26 = scalar_lea.smem %s0, 13
  %s27 = sld [smem:[%s26]]
  %s28 = scalar_lea.smem %s0, 14
  %s29 = sld [smem:[%s28]]
  %s30 = scalar_lea.smem %s0, 15
  %s31 = sld [smem:[%s30]]
  %s32 = scalar_lea.smem %s0, 16
  %s33 = sld [smem:[%s32]]
  %s34 = scalar_lea.smem %s0, 17
  %s35 = sld [smem:[%s34]]
  %s36 = scalar_lea.smem %s0, 18
  %s37 = sld [smem:[%s36]]
  %s38 = scalar_lea.smem %s0, 19
  %s39 = sld [smem:[%s38]]
  %s40 = scalar_lea.smem %s0, 20
  %s41 = sld [smem:[%s40]]
  %s42 = scalar_lea.smem %s0, 21
  %s43 = sld [smem:[%s42]]
  %s44 = scalar_lea.smem %s0, 22
  %s45 = sld [smem:[%s44]]
  %s46 = scalar_lea.smem %s0, 23
  %s47 = sld [smem:[%s46]]
  %s48 = scalar_lea.smem %s0, 24
  %s49 = sld [smem:[%s48]]
  %s50 = scalar_lea.smem %s0, 25
  %s51 = sld [smem:[%s50]]
  %s52 = scalar_lea.smem %s0, 26
  %s53 = sld [smem:[%s52]]
  %s54 = scalar_lea.smem %s0, 27
  %s55 = sld [smem:[%s54]]
  %s56 = scalar_lea.smem %s0, 28
  %s57 = sld [smem:[%s56]]
  %s58 = scalar_lea.smem %s0, 29
  %s59 = sld [smem:[%s58]]
  %s60 = scalar_lea.smem %s0, 30
  %s61 = sld [smem:[%s60]]
  %s62 = sld [smem:[#allocation0]]
  $region130: #{bert_ner_forward.1} parent=0
    _
  %s64 = ssub.s32 1, %s62
  %s65 = scalar_select 0, %s64, %s62
  // Predicated region
  $region2: #{bert_ner_forward.1} parent=0 // pred_check
    _
  $region3: #{bert_ner_forward.1} parent=0 // pred_check_branch
    %67 = sbr.rel (0) target = $region5
  $region4: #{bert_ner_forward.1} parent=0 // pred_region
    _
  $region5: #{bert_ner_forward.1} parent=0 // pred_fallthru
    _
  // Predicated region
  $region6: #{bert_ner_forward.1} parent=0 // pred_check
    _
  $region7: #{bert_ner_forward.1} parent=0 // pred_check_branch
    %69 = sbr.rel (0) target = $region9
  $region8: #{bert_ner_forward.1} parent=0 // pred_region
    _
  $region9: #{bert_ner_forward.1} parent=0 // pred_fallthru
    _
  // Predicated region
  $region10: #{bert_ner_forward.1} parent=0 // pred_check
    _
  $region11: #{bert_ner_forward.1} parent=0 // pred_check_branch
    %71 = sbr.rel (0) target = $region13
  $region12: #{bert_ner_forward.1} parent=0 // pred_region
    _
  $region13: #{bert_ner_forward.1} parent=0 // pred_fallthru
    _
  // Predicated region
  $region14: #{bert_ner_forward.1} parent=0 // pred_check
    _
  $region15: #{bert_ner_forward.1} parent=0 // pred_check_branch
    %73 = sbr.rel (0) target = $region17
  $region16: #{bert_ner_forward.1} parent=0 // pred_region
    _
  $region17: #{bert_ner_forward.1} parent=0 // pred_fallthru
    _
  // Predicated region
  $region18: #{bert_ner_forward.1} parent=0 // pred_check
    _
  $region19: #{bert_ner_forward.1} parent=0 // pred_check_branch
    %75 = sbr.rel (0) target = $region21
  $region20: #{bert_ner_forward.1} parent=0 // pred_region
    _
  $region21: #{bert_ner_forward.1} parent=0 // pred_fallthru
    _
  // Predicated region
  $region22: #{bert_ner_forward.1} parent=0 // pred_check
    _
  $region23: #{bert_ner_forward.1} parent=0 // pred_check_branch
    %77 = sbr.rel (0) target = $region25
  $region24: #{bert_ner_forward.1} parent=0 // pred_region
    _
  $region25: #{bert_ner_forward.1} parent=0 // pred_fallthru
    _
  // Predicated region
  $region26: #{bert_ner_forward.1} parent=0 // pred_check
    _
  $region27: #{bert_ner_forward.1} parent=0 // pred_check_branch
    %79 = sbr.rel (0) target = $region29
  $region28: #{bert_ner_forward.1} parent=0 // pred_region
    _
  $region29: #{bert_ner_forward.1} parent=0 // pred_fallthru
    _
  // Predicated region
  $region30: #{bert_ner_forward.1} parent=0 // pred_check
    _
  $region31: #{bert_ner_forward.1} parent=0 // pred_check_branch
    %81 = sbr.rel (0) target = $region33
  $region32: #{bert_ner_forward.1} parent=0 // pred_region
    _
  $region33: #{bert_ner_forward.1} parent=0 // pred_fallthru
    _
  // Predicated region
  $region34: #{bert_ner_forward.1} parent=0 // pred_check
    _
  $region35: #{bert_ner_forward.1} parent=0 // pred_check_branch
    %83 = sbr.rel (0) target = $region37
  $region36: #{bert_ner_forward.1} parent=0 // pred_region
    _
  $region37: #{bert_ner_forward.1} parent=0 // pred_fallthru
    _
  // Predicated region
  $region38: #{bert_ner_forward.1} parent=0 // pred_check
    _
  $region39: #{bert_ner_forward.1} parent=0 // pred_check_branch
    %85 = sbr.rel (0) target = $region41
  $region40: #{bert_ner_forward.1} parent=0 // pred_region
    _
  $region41: #{bert_ner_forward.1} parent=0 // pred_fallthru
    _
  // Predicated region
  $region42: #{bert_ner_forward.1} parent=0 // pred_check
    _
  $region43: #{bert_ner_forward.1} parent=0 // pred_check_branch
    %87 = sbr.rel (0) target = $region45
  $region44: #{bert_ner_forward.1} parent=0 // pred_region
    _
  $region45: #{bert_ner_forward.1} parent=0 // pred_fallthru
    _
  // Predicated region
  $region46: #{bert_ner_forward.1} parent=0 // pred_check
    _
  $region47: #{bert_ner_forward.1} parent=0 // pred_check_branch
    %89 = sbr.rel (0) target = $region49
  $region48: #{bert_ner_forward.1} parent=0 // pred_region
    _
  $region49: #{bert_ner_forward.1} parent=0 // pred_fallthru
    _
  // Predicated region
  $region50: #{bert_ner_forward.1} parent=0 // pred_check
    _
  $region51: #{bert_ner_forward.1} parent=0 // pred_check_branch
    %91 = sbr.rel (0) target = $region53
  $region52: #{bert_ner_forward.1} parent=0 // pred_region
    _
  $region53: #{bert_ner_forward.1} parent=0 // pred_fallthru
    _
  // Predicated region
  $region54: #{bert_ner_forward.1} parent=0 // pred_check
    _
  $region55: #{bert_ner_forward.1} parent=0 // pred_check_branch
    %93 = sbr.rel (0) target = $region57
  $region56: #{bert_ner_forward.1} parent=0 // pred_region
    _
  $region57: #{bert_ner_forward.1} parent=0 // pred_fallthru
    _
  // Predicated region
  $region58: #{bert_ner_forward.1} parent=0 // pred_check
    _
  $region59: #{bert_ner_forward.1} parent=0 // pred_check_branch
    %95 = sbr.rel (0) target = $region61
  $region60: #{bert_ner_forward.1} parent=0 // pred_region
    _
  $region61: #{bert_ner_forward.1} parent=0 // pred_fallthru
    _
  // Predicated region
  $region62: #{bert_ner_forward.1} parent=0 // pred_check
    _
  $region63: #{bert_ner_forward.1} parent=0 // pred_check_branch
    %97 = sbr.rel (0) target = $region65
  $region64: #{bert_ner_forward.1} parent=0 // pred_region
    _
  $region65: #{bert_ner_forward.1} parent=0 // pred_fallthru
    _
  // Predicated region
  $region66: #{bert_ner_forward.1} parent=0 // pred_check
    _
  $region67: #{bert_ner_forward.1} parent=0 // pred_check_branch
    %99 = sbr.rel (0) target = $region69
  $region68: #{bert_ner_forward.1} parent=0 // pred_region
    _
  $region69: #{bert_ner_forward.1} parent=0 // pred_fallthru
    _
  // Predicated region
  $region70: #{bert_ner_forward.1} parent=0 // pred_check
    _
  $region71: #{bert_ner_forward.1} parent=0 // pred_check_branch
    %101 = sbr.rel (0) target = $region73
  $region72: #{bert_ner_forward.1} parent=0 // pred_region
    _
  $region73: #{bert_ner_forward.1} parent=0 // pred_fallthru
    _
  // Predicated region
  $region74: #{bert_ner_forward.1} parent=0 // pred_check
    _
  $region75: #{bert_ner_forward.1} parent=0 // pred_check_branch
    %103 = sbr.rel (0) target = $region77
  $region76: #{bert_ner_forward.1} parent=0 // pred_region
    _
  $region77: #{bert_ner_forward.1} parent=0 // pred_fallthru
    _
  // Predicated region
  $region78: #{bert_ner_forward.1} parent=0 // pred_check
    _
  $region79: #{bert_ner_forward.1} parent=0 // pred_check_branch
    %105 = sbr.rel (0) target = $region81
  $region80: #{bert_ner_forward.1} parent=0 // pred_region
    _
  $region81: #{bert_ner_forward.1} parent=0 // pred_fallthru
    _
  // Predicated region
  $region82: #{bert_ner_forward.1} parent=0 // pred_check
    _
  $region83: #{bert_ner_forward.1} parent=0 // pred_check_branch
    %107 = sbr.rel (0) target = $region85
  $region84: #{bert_ner_forward.1} parent=0 // pred_region
    _
  $region85: #{bert_ner_forward.1} parent=0 // pred_fallthru
    _
  // Predicated region
  $region86: #{bert_ner_forward.1} parent=0 // pred_check
    _
  $region87: #{bert_ner_forward.1} parent=0 // pred_check_branch
    %109 = sbr.rel (0) target = $region89
  $region88: #{bert_ner_forward.1} parent=0 // pred_region
    _
  $region89: #{bert_ner_forward.1} parent=0 // pred_fallthru
    _
  // Predicated region
  $region90: #{bert_ner_forward.1} parent=0 // pred_check
    _
  $region91: #{bert_ner_forward.1} parent=0 // pred_check_branch
    %111 = sbr.rel (0) target = $region93
  $region92: #{bert_ner_forward.1} parent=0 // pred_region
    _
  $region93: #{bert_ner_forward.1} parent=0 // pred_fallthru
    _
  // Predicated region
  $region94: #{bert_ner_forward.1} parent=0 // pred_check
    _
  $region95: #{bert_ner_forward.1} parent=0 // pred_check_branch
    %113 = sbr.rel (0) target = $region97
  $region96: #{bert_ner_forward.1} parent=0 // pred_region
    _
  $region97: #{bert_ner_forward.1} parent=0 // pred_fallthru
    _
  // Predicated region
  $region98: #{bert_ner_forward.1} parent=0 // pred_check
    _
  $region99: #{bert_ner_forward.1} parent=0 // pred_check_branch
    %115 = sbr.rel (0) target = $region101
  $region100: #{bert_ner_forward.1} parent=0 // pred_region
    _
  $region101: #{bert_ner_forward.1} parent=0 // pred_fallthru
    _
  // Predicated region
  $region102: #{bert_ner_forward.1} parent=0 // pred_check
    _
  $region103: #{bert_ner_forward.1} parent=0 // pred_check_branch
    %117 = sbr.rel (0) target = $region105
  $region104: #{bert_ner_forward.1} parent=0 // pred_region
    _
  $region105: #{bert_ner_forward.1} parent=0 // pred_fallthru
    _
  // Predicated region
  $region106: #{bert_ner_forward.1} parent=0 // pred_check
    _
  $region107: #{bert_ner_forward.1} parent=0 // pred_check_branch
    %119 = sbr.rel (0) target = $region109
  $region108: #{bert_ner_forward.1} parent=0 // pred_region
    _
  $region109: #{bert_ner_forward.1} parent=0 // pred_fallthru
    _
  // Predicated region
  $region110: #{bert_ner_forward.1} parent=0 // pred_check
    _
  $region111: #{bert_ner_forward.1} parent=0 // pred_check_branch
    %121 = sbr.rel (0) target = $region113
  $region112: #{bert_ner_forward.1} parent=0 // pred_region
    _
  $region113: #{bert_ner_forward.1} parent=0 // pred_fallthru
    _
  // Predicated region
  $region114: #{bert_ner_forward.1} parent=0 // pred_check
    _
  $region115: #{bert_ner_forward.1} parent=0 // pred_check_branch
    %123 = sbr.rel (0) target = $region117
  $region116: #{bert_ner_forward.1} parent=0 // pred_region
    _
  $region117: #{bert_ner_forward.1} parent=0 // pred_fallthru
    _
  // Predicated region
  $region118: #{bert_ner_forward.1} parent=0 // pred_check
    _
  $region119: #{bert_ner_forward.1} parent=0 // pred_check_branch
    %125 = sbr.rel (0) target = $region121
  $region120: #{bert_ner_forward.1} parent=0 // pred_region
    _
  $region121: #{bert_ner_forward.1} parent=0 // pred_fallthru
    _
  %v127 = vld [vmem:[%s3] sm:$0x3]
  %v128 = vld [vmem:[%s1] sm:$0xff]
  %v129 = vld [vmem:[%s1 + $0x8] sm:$0xff]
  %v130 = vld [vmem:[%s5] sm:$0x1]
  %v131 = vld [vmem:[%s7] sm:$0x1]
  %vm132 = vcmask 261120
  %v133 = vsel %vm132, %v128, 0.0
  %134 = vadd.xlane.f32.xlu0 %v133
  %v135 = vpop.xlane.xlu0 %134
  %v136 = vsel %vm132, %v129, 0.0
  %137 = vadd.xlane.f32.xlu0 %v136
  %v138 = vpop.xlane.xlu0 %137
  %v139 = vrcp.pop 32.0
  %v140 = vmul.f32 %v135, %v139
  %v141 = vmul.f32 %v138, %v139
  %v142 = vsub.f32 %v128, %v140
  %v143 = vsub.f32 %v129, %v141
  %v144 = vmul.f32 %v142, %v142
  %v145 = vmul.f32 %v143, %v143
  %v146 = vsel %vm132, %v144, 0.0
  %147 = vadd.xlane.f32.xlu0 %v146
  %v148 = vpop.xlane.xlu0 %147
  %v149 = vsel %vm132, %v145, 0.0
  %150 = vadd.xlane.f32.xlu0 %v149
  %v151 = vpop.xlane.xlu0 %150
  %v152 = vmul.f32 %v148, %v139
  %v153 = vmul.f32 %v151, %v139
  %v154 = vadd.f32 %v152, 1e-12
  %v155 = vadd.f32 %v153, 1e-12
  %v156 = vrsqrt.pop %v154
  %v157 = vrsqrt.pop %v155
  %v158 = vmul.f32 %v142, %v156
  %v159 = vmul.f32 %v143, %v157
  %v161 = vlaneseq
  %v162 = vshrl.u32 %v161, 7
  %v163 = vsub.s32 0, %v162
  %v164 = vrot.slane %v130, %v163
  %v166 = vmul.f32 %v158, %v164
  %v167 = vmul.f32 %v159, %v164
  %v169 = vlaneseq
  %v170 = vshrl.u32 %v169, 7
  %v171 = vsub.s32 0, %v170
  %v172 = vrot.slane %v131, %v171
  %v174 = vadd.f32 %v166, %v172
  %v175 = vadd.f32 %v167, %v172
  %v176 = vld [vmem:[%s9] sm:$0xf]
  %v177 = vld [vmem:[%s9 + $0x4] sm:$0xf]
  %v178 = vld [vmem:[%s9 + $0x8] sm:$0xf]
  %v179 = vld [vmem:[%s9 + $0xc] sm:$0xf]
  %v180 = vld [vmem:[%s11] sm:$0x1]
  %v181 = vld [vmem:[%s13] sm:$0xf]
  %v182 = vld [vmem:[%s13 + $0x4] sm:$0xf]
  %v183 = vld [vmem:[%s13 + $0x8] sm:$0xf]
  %v184 = vld [vmem:[%s13 + $0xc] sm:$0xf]
  %v185 = vld [vmem:[%s15] sm:$0x1]
  %v186 = vld [vmem:[%s17] sm:$0x1]
  %v187 = vld [vmem:[%s19] sm:$0x1]
  %v188 = vld [vmem:[%s21] sm:$0xf]
  %v189 = vld [vmem:[%s21 + $0x4] sm:$0xf]
  %v190 = vld [vmem:[%s21 + $0x8] sm:$0xf]
  %v191 = vld [vmem:[%s21 + $0xc] sm:$0xf]
  %v192 = vld [vmem:[%s23] sm:$0x1]
  %v193 = vld [vmem:[%s25] sm:$0xf]
  %v194 = vld [vmem:[%s25 + $0x4] sm:$0xf]
  %v195 = vld [vmem:[%s25 + $0x8] sm:$0xf]
  %v196 = vld [vmem:[%s25 + $0xc] sm:$0xf]
  %v197 = vld [vmem:[%s25 + $0x10] sm:$0xf]
  %v198 = vld [vmem:[%s25 + $0x14] sm:$0xf]
  %v199 = vld [vmem:[%s25 + $0x18] sm:$0xf]
  %v200 = vld [vmem:[%s25 + $0x1c] sm:$0xf]
  %v201 = vld [vmem:[%s27] sm:$0x1]
  %v202 = vld [vmem:[%s29] sm:$0x1]
  %v203 = vld [vmem:[%s31] sm:$0x1]
  %v204 = vpack.c.bf16 %v175, %v174
  %v206 = vlaneseq
  %v207 = vshrl.u32 %v206, 7
  %v208 = vsub.s32 0, %v207
  %v209 = vrot.slane %v180, %v208
  %v215 = vunpack.c.l.b16 %v176
  %v216 = vunpack.c.l.b16 %v177
  %v217 = vunpack.c.l.b16 %v178
  %v218 = vunpack.c.l.b16 %v179
  %v219 = vpack.c.b16 %v216, %v215
  %v220 = vpack.c.b16 %v218, %v217
  %v224 = vsel %vm132, %v204, 0
  %226 = vmatprep.subr.bf16.mxu0 0
  %227 = vmatpush1.bf16.msra.mxu0 0
  %228 = vmatprep.subr.bf16.mxu0 0
  %229 = vmatpush1.bf16.msra.mxu0 0
  %230 = vmatprep.subr.bf16.mxu0 0
  %231 = vmatpush1.bf16.msra.mxu0 0
  %232 = vmatprep.subr.bf16.mxu0 0
  %233 = vmatpush1.bf16.msra.mxu0 0
  %234 = vmatprep.subr.bf16.mxu0 0
  %235 = vmatpush1.bf16.msra.mxu0 0
  %236 = vmatprep.subr.bf16.mxu0 0
  %237 = vmatpush1.bf16.msra.mxu0 0
  %238 = vmatprep.subr.bf16.mxu0 0
  %239 = vmatpush1.bf16.msra.mxu0 %v220
  %240 = vmatprep.subr.bf16.mxu0 0
  %241 = vmatpush1.bf16.msra.mxu0 %v219
  %242 = vmatprep.subr.bf16.mxu0 0
  %243 = vmatpush2.bf16.msra.mxu0 0
  %244 = vmatprep.subr.bf16.mxu0 0
  %245 = vmatpush2.bf16.msra.mxu0 0
  %246 = vmatprep.subr.bf16.mxu0 0
  %247 = vmatpush2.bf16.msra.mxu0 0
  %248 = vmatprep.subr.bf16.mxu0 0
  %249 = vmatpush2.bf16.msra.mxu0 0
  %250 = vmatprep.subr.bf16.mxu0 0
  %251 = vmatpush2.bf16.msra.mxu0 0
  %252 = vmatprep.subr.bf16.mxu0 0
  %253 = vmatpush2.bf16.msra.mxu0 0
  %254 = vmatprep.subr.bf16.mxu0 0
  %255 = vmatpush2.bf16.msra.mxu0 0
  %256 = vmatprep.subr.bf16.mxu0 0
  %257 = vmatpush2.bf16.msra.mxu0 0
  %258 = vmatprep.mubr.bf16.mxu0 0
  %259 = vmatmul.mubr.bf16.gmra.mxu0 %v224
  %v260 = vpop.f32.mrf.mxu0
  %v261 = vadd.f32 %v209, %v260
  %v262 = vpop.f32.mrf.mxu0
  %v263 = vpop.f32.mrf.mxu0
  %v264 = vadd.f32 %v209, %v263
  %v265 = vpop.f32.mrf.mxu0
  %266 = vdwg.mxu0
  %v267 = vpack.c.bf16 %v261, %v261
  %v268 = vlaneseq
  %v269 = vshrl.u32 %v268, 7
  %v270 = vsub.s32 0, %v269
  %v271 = vrot.slane %v127, %v270
  %273 = vrot.lane.b32.xlu0 %v267, 96
  %v274 = vpop.permute.xlu0 %273
  %vm275 = vcmask 130048
  %v277 = vsel %vm275, %v267, 0
  %v280 = vsel %vm275, %v274, 0
  %282 = vmatprep.subr.bf16.mxu0 0
  %283 = vmatpush1.bf16.xpose.msra.mxu0 0
  %284 = vmatprep.subr.bf16.mxu0 0
  %285 = vmatpush1.bf16.xpose.msra.mxu0 0
  %286 = vmatprep.subr.bf16.mxu0 0
  %287 = vmatpush1.bf16.xpose.msra.mxu0 0
  %288 = vmatprep.subr.bf16.mxu0 0
  %289 = vmatpush1.bf16.xpose.msra.mxu0 0
  %290 = vmatprep.subr.bf16.mxu0 0
  %291 = vmatpush1.bf16.xpose.msra.mxu0 0
  %292 = vmatprep.subr.bf16.mxu0 0
  %293 = vmatpush1.bf16.xpose.msra.mxu0 0
  %294 = vmatprep.subr.bf16.mxu0 0
  %295 = vmatpush1.bf16.xpose.msra.mxu0 0
  %296 = vmatprep.subr.bf16.mxu0 0
  %297 = vmatpush1.bf16.xpose.msra.mxu0 %v280
  %298 = vmatprep.subr.bf16.mxu0 0
  %299 = vmatpush2.bf16.xpose.msra.mxu0 0
  %300 = vmatprep.subr.bf16.mxu0 0
  %301 = vmatpush2.bf16.xpose.msra.mxu0 0
  %302 = vmatprep.subr.bf16.mxu0 0
  %303 = vmatpush2.bf16.xpose.msra.mxu0 0
  %304 = vmatprep.subr.bf16.mxu0 0
  %305 = vmatpush2.bf16.xpose.msra.mxu0 0
  %306 = vmatprep.subr.bf16.mxu0 0
  %307 = vmatpush2.bf16.xpose.msra.mxu0 0
  %308 = vmatprep.subr.bf16.mxu0 0
  %309 = vmatpush2.bf16.xpose.msra.mxu0 0
  %310 = vmatprep.subr.bf16.mxu0 0
  %311 = vmatpush2.bf16.xpose.msra.mxu0 0
  %312 = vmatprep.subr.bf16.mxu0 0
  %313 = vmatpush2.bf16.xpose.msra.mxu0 0
  %314 = vmatprep.mubr.bf16.mxu0 0
  %315 = vmatmul.mubr.bf16.gmra.mxu0 %v277
  %v316 = vpop.f32.mrf.mxu0
  %v317 = vadd.f32 %v271, %v316
  %v318 = vpop.f32.mrf.mxu0
  %v319 = vpop.f32.mrf.mxu0
  %v320 = vpop.f32.mrf.mxu0
  %321 = vdwg.mxu0
  %vm322 = vcmask 64512
  %v323 = vsel %vm322, %v317, -inf
  %324 = vmax.xlane.f32.xlu0 %v323
  %v325 = vpop.xlane.xlu0 %324
  %v326 = vsub.f32 %v317, %v325
  %v327 = vmul.f32 %v326, 1.442695
  %v328 = vpow.pop %v327
  %v329 = vsel %vm322, %v328, 0.0
  %330 = vadd.xlane.f32.xlu0 %v329
  %v331 = vpop.xlane.xlu0 %330
  %v332 = vrcp.pop %v331
  %v333 = vmul.f32 %v328, %v332
  %v334 = vpack.c.bf16 %v333, %v333
  %335 = vrot.lane.b32.xlu0 %v267, 64
  %v336 = vpop.permute.xlu0 %335
  %v338 = vsel %vm322, %v334, 0
  %vm340 = vcmask 1043456
  %v342 = vsel %vm340, %v336, 0
  %344 = vmatprep.subr.bf16.mxu0 0
  %345 = vmatpush1.bf16.msra.mxu0 0
  %346 = vmatprep.subr.bf16.mxu0 0
  %347 = vmatpush1.bf16.msra.mxu0 0
  %348 = vmatprep.subr.bf16.mxu0 0
  %349 = vmatpush1.bf16.msra.mxu0 0
  %350 = vmatprep.subr.bf16.mxu0 0
  %351 = vmatpush1.bf16.msra.mxu0 0
  %352 = vmatprep.subr.bf16.mxu0 0
  %353 = vmatpush1.bf16.msra.mxu0 0
  %354 = vmatprep.subr.bf16.mxu0 0
  %355 = vmatpush1.bf16.msra.mxu0 0
  %356 = vmatprep.subr.bf16.mxu0 0
  %357 = vmatpush1.bf16.msra.mxu0 0
  %358 = vmatprep.subr.bf16.mxu0 0
  %359 = vmatpush1.bf16.msra.mxu0 %v342
  %360 = vmatprep.subr.bf16.mxu0 0
  %361 = vmatpush2.bf16.msra.mxu0 0
  %362 = vmatprep.subr.bf16.mxu0 0
  %363 = vmatpush2.bf16.msra.mxu0 0
  %364 = vmatprep.subr.bf16.mxu0 0
  %365 = vmatpush2.bf16.msra.mxu0 0
  %366 = vmatprep.subr.bf16.mxu0 0
  %367 = vmatpush2.bf16.msra.mxu0 0
  %368 = vmatprep.subr.bf16.mxu0 0
  %369 = vmatpush2.bf16.msra.mxu0 0
  %370 = vmatprep.subr.bf16.mxu0 0
  %371 = vmatpush2.bf16.msra.mxu0 0
  %372 = vmatprep.subr.bf16.mxu0 0
  %373 = vmatpush2.bf16.msra.mxu0 0
  %374 = vmatprep.subr.bf16.mxu0 0
  %375 = vmatpush2.bf16.msra.mxu0 0
  %376 = vmatprep.mubr.bf16.mxu0 0
  %377 = vmatmul.mubr.bf16.gmra.mxu0 %v338
  %v378 = vpop.f32.mrf.mxu0
  %v379 = vadd.f32 0.0, %v378
  %v380 = vpop.f32.mrf.mxu0
  %v381 = vpop.f32.mrf.mxu0
  %v382 = vpop.f32.mrf.mxu0
  %383 = vdwg.mxu0
  %384 = vrot.lane.b32.xlu0 %v267, 112
  %v385 = vpop.permute.xlu0 %384
  %386 = vrot.lane.b32.xlu0 %v267, 80
  %v387 = vpop.permute.xlu0 %386
  %v389 = vsel %vm275, %v385, 0
  %v392 = vsel %vm275, %v387, 0
  %394 = vmatprep.subr.bf16.mxu0 0
  %395 = vmatpush1.bf16.xpose.msra.mxu0 0
  %396 = vmatprep.subr.bf16.mxu0 0
  %397 = vmatpush1.bf16.xpose.msra.mxu0 0
  %398 = vmatprep.subr.bf16.mxu0 0
  %399 = vmatpush1.bf16.xpose.msra.mxu0 0
  %400 = vmatprep.subr.bf16.mxu0 0
  %401 = vmatpush1.bf16.xpose.msra.mxu0 0
  %402 = vmatprep.subr.bf16.mxu0 0
  %403 = vmatpush1.bf16.xpose.msra.mxu0 0
  %404 = vmatprep.subr.bf16.mxu0 0
  %405 = vmatpush1.bf16.xpose.msra.mxu0 0
  %406 = vmatprep.subr.bf16.mxu0 0
  %407 = vmatpush1.bf16.xpose.msra.mxu0 0
  %408 = vmatprep.subr.bf16.mxu0 0
  %409 = vmatpush1.bf16.xpose.msra.mxu0 %v392
  %410 = vmatprep.subr.bf16.mxu0 0
  %411 = vmatpush2.bf16.xpose.msra.mxu0 0
  %412 = vmatprep.subr.bf16.mxu0 0
  %413 = vmatpush2.bf16.xpose.msra.mxu0 0
  %414 = vmatprep.subr.bf16.mxu0 0
  %415 = vmatpush2.bf16.xpose.msra.mxu0 0
  %416 = vmatprep.subr.bf16.mxu0 0
  %417 = vmatpush2.bf16.xpose.msra.mxu0 0
  %418 = vmatprep.subr.bf16.mxu0 0
  %419 = vmatpush2.bf16.xpose.msra.mxu0 0
  %420 = vmatprep.subr.bf16.mxu0 0
  %421 = vmatpush2.bf16.xpose.msra.mxu0 0
  %422 = vmatprep.subr.bf16.mxu0 0
  %423 = vmatpush2.bf16.xpose.msra.mxu0 0
  %424 = vmatprep.subr.bf16.mxu0 0
  %425 = vmatpush2.bf16.xpose.msra.mxu0 0
  %426 = vmatprep.mubr.bf16.mxu0 0
  %427 = vmatmul.mubr.bf16.gmra.mxu0 %v389
  %v428 = vpop.f32.mrf.mxu0
  %v429 = vadd.f32 %v271, %v428
  %v430 = vpop.f32.mrf.mxu0
  %v431 = vpop.f32.mrf.mxu0
  %v432 = vpop.f32.mrf.mxu0
  %433 = vdwg.mxu0
  %v434 = vsel %vm322, %v429, -inf
  %435 = vmax.xlane.f32.xlu0 %v434
  %v436 = vpop.xlane.xlu0 %435
  %v437 = vsub.f32 %v429, %v436
  %v438 = vmul.f32 %v437, 1.442695
  %v439 = vpow.pop %v438
  %v440 = vsel %vm322, %v439, 0.0
  %441 = vadd.xlane.f32.xlu0 %v440
  %v442 = vpop.xlane.xlu0 %441
  %v443 = vrcp.pop %v442
  %v444 = vmul.f32 %v439, %v443
  %v445 = vpack.c.bf16 %v444, %v444
  %446 = vrot.lane.b32.xlu0 %v267, 48
  %v447 = vpop.permute.xlu0 %446
  %v449 = vsel %vm322, %v445, 0
  %v452 = vsel %vm340, %v447, 0
  %454 = vmatprep.subr.bf16.mxu0 0
  %455 = vmatpush1.bf16.msra.mxu0 0
  %456 = vmatprep.subr.bf16.mxu0 0
  %457 = vmatpush1.bf16.msra.mxu0 0
  %458 = vmatprep.subr.bf16.mxu0 0
  %459 = vmatpush1.bf16.msra.mxu0 0
  %460 = vmatprep.subr.bf16.mxu0 0
  %461 = vmatpush1.bf16.msra.mxu0 0
  %462 = vmatprep.subr.bf16.mxu0 0
  %463 = vmatpush1.bf16.msra.mxu0 0
  %464 = vmatprep.subr.bf16.mxu0 0
  %465 = vmatpush1.bf16.msra.mxu0 0
  %466 = vmatprep.subr.bf16.mxu0 0
  %467 = vmatpush1.bf16.msra.mxu0 0
  %468 = vmatprep.subr.bf16.mxu0 0
  %469 = vmatpush1.bf16.msra.mxu0 %v452
  %470 = vmatprep.subr.bf16.mxu0 0
  %471 = vmatpush2.bf16.msra.mxu0 0
  %472 = vmatprep.subr.bf16.mxu0 0
  %473 = vmatpush2.bf16.msra.mxu0 0
  %474 = vmatprep.subr.bf16.mxu0 0
  %475 = vmatpush2.bf16.msra.mxu0 0
  %476 = vmatprep.subr.bf16.mxu0 0
  %477 = vmatpush2.bf16.msra.mxu0 0
  %478 = vmatprep.subr.bf16.mxu0 0
  %479 = vmatpush2.bf16.msra.mxu0 0
  %480 = vmatprep.subr.bf16.mxu0 0
  %481 = vmatpush2.bf16.msra.mxu0 0
  %482 = vmatprep.subr.bf16.mxu0 0
  %483 = vmatpush2.bf16.msra.mxu0 0
  %484 = vmatprep.subr.bf16.mxu0 0
  %485 = vmatpush2.bf16.msra.mxu0 0
  %486 = vmatprep.mubr.bf16.mxu0 0
  %487 = vmatmul.mubr.bf16.gmra.mxu0 %v449
  %v488 = vpop.f32.mrf.mxu0
  %v489 = vadd.f32 0.0, %v488
  %v490 = vpop.f32.mrf.mxu0
  %v491 = vpop.f32.mrf.mxu0
  %v492 = vpop.f32.mrf.mxu0
  %493 = vdwg.mxu0
  %495 = vrot.lane.b32.xlu0 %v489, 16
  %v496 = vpop.permute.xlu0 %495
  %v498 = vsel %vm275, %v379, %v496
  %v499 = vpack.c.bf16 %v264, %v264
  %v500 = vlaneseq
  %v501 = vshrl.u32 %v500, 7
  %v502 = vsub.s32 1, %v501
  %v503 = vrot.slane %v127, %v502
  %505 = vrot.lane.b32.xlu0 %v499, 96
  %v506 = vpop.permute.xlu0 %505
  %v508 = vsel %vm275, %v499, 0
  %v511 = vsel %vm275, %v506, 0
  %513 = vmatprep.subr.bf16.mxu0 0
  %514 = vmatpush1.bf16.xpose.msra.mxu0 0
  %515 = vmatprep.subr.bf16.mxu0 0
  %516 = vmatpush1.bf16.xpose.msra.mxu0 0
  %517 = vmatprep.subr.bf16.mxu0 0
  %518 = vmatpush1.bf16.xpose.msra.mxu0 0
  %519 = vmatprep.subr.bf16.mxu0 0
  %520 = vmatpush1.bf16.xpose.msra.mxu0 0
  %521 = vmatprep.subr.bf16.mxu0 0
  %522 = vmatpush1.bf16.xpose.msra.mxu0 0
  %523 = vmatprep.subr.bf16.mxu0 0
  %524 = vmatpush1.bf16.xpose.msra.mxu0 0
  %525 = vmatprep.subr.bf16.mxu0 0
  %526 = vmatpush1.bf16.xpose.msra.mxu0 0
  %527 = vmatprep.subr.bf16.mxu0 0
  %528 = vmatpush1.bf16.xpose.msra.mxu0 %v511
  %529 = vmatprep.subr.bf16.mxu0 0
  %530 = vmatpush2.bf16.xpose.msra.mxu0 0
  %531 = vmatprep.subr.bf16.mxu0 0
  %532 = vmatpush2.bf16.xpose.msra.mxu0 0
  %533 = vmatprep.subr.bf16.mxu0 0
  %534 = vmatpush2.bf16.xpose.msra.mxu0 0
  %535 = vmatprep.subr.bf16.mxu0 0
  %536 = vmatpush2.bf16.xpose.msra.mxu0 0
  %537 = vmatprep.subr.bf16.mxu0 0
  %538 = vmatpush2.bf16.xpose.msra.mxu0 0
  %539 = vmatprep.subr.bf16.mxu0 0
  %540 = vmatpush2.bf16.xpose.msra.mxu0 0
  %541 = vmatprep.subr.bf16.mxu0 0
  %542 = vmatpush2.bf16.xpose.msra.mxu0 0
  %543 = vmatprep.subr.bf16.mxu0 0
  %544 = vmatpush2.bf16.xpose.msra.mxu0 0
  %545 = vmatprep.mubr.bf16.mxu0 0
  %546 = vmatmul.mubr.bf16.gmra.mxu0 %v508
  %v547 = vpop.f32.mrf.mxu0
  %v548 = vadd.f32 %v503, %v547
  %v549 = vpop.f32.mrf.mxu0
  %v550 = vpop.f32.mrf.mxu0
  %v551 = vpop.f32.mrf.mxu0
  %552 = vdwg.mxu0
  %v553 = vsel %vm322, %v548, -inf
  %554 = vmax.xlane.f32.xlu0 %v553
  %v555 = vpop.xlane.xlu0 %554
  %v556 = vsub.f32 %v548, %v555
  %v557 = vmul.f32 %v556, 1.442695
  %v558 = vpow.pop %v557
  %v559 = vsel %vm322, %v558, 0.0
  %560 = vadd.xlane.f32.xlu0 %v559
  %v561 = vpop.xlane.xlu0 %560
  %v562 = vrcp.pop %v561
  %v563 = vmul.f32 %v558, %v562
  %v564 = vpack.c.bf16 %v563, %v563
  %565 = vrot.lane.b32.xlu0 %v499, 64
  %v566 = vpop.permute.xlu0 %565
  %v568 = vsel %vm322, %v564, 0
  %v571 = vsel %vm340, %v566, 0
  %573 = vmatprep.subr.bf16.mxu0 0
  %574 = vmatpush1.bf16.msra.mxu0 0
  %575 = vmatprep.subr.bf16.mxu0 0
  %576 = vmatpush1.bf16.msra.mxu0 0
  %577 = vmatprep.subr.bf16.mxu0 0
  %578 = vmatpush1.bf16.msra.mxu0 0
  %579 = vmatprep.subr.bf16.mxu0 0
  %580 = vmatpush1.bf16.msra.mxu0 0
  %581 = vmatprep.subr.bf16.mxu0 0
  %582 = vmatpush1.bf16.msra.mxu0 0
  %583 = vmatprep.subr.bf16.mxu0 0
  %584 = vmatpush1.bf16.msra.mxu0 0
  %585 = vmatprep.subr.bf16.mxu0 0
  %586 = vmatpush1.bf16.msra.mxu0 0
  %587 = vmatprep.subr.bf16.mxu0 0
  %588 = vmatpush1.bf16.msra.mxu0 %v571
  %589 = vmatprep.subr.bf16.mxu0 0
  %590 = vmatpush2.bf16.msra.mxu0 0
  %591 = vmatprep.subr.bf16.mxu0 0
  %592 = vmatpush2.bf16.msra.mxu0 0
  %593 = vmatprep.subr.bf16.mxu0 0
  %594 = vmatpush2.bf16.msra.mxu0 0
  %595 = vmatprep.subr.bf16.mxu0 0
  %596 = vmatpush2.bf16.msra.mxu0 0
  %597 = vmatprep.subr.bf16.mxu0 0
  %598 = vmatpush2.bf16.msra.mxu0 0
  %599 = vmatprep.subr.bf16.mxu0 0
  %600 = vmatpush2.bf16.msra.mxu0 0
  %601 = vmatprep.subr.bf16.mxu0 0
  %602 = vmatpush2.bf16.msra.mxu0 0
  %603 = vmatprep.subr.bf16.mxu0 0
  %604 = vmatpush2.bf16.msra.mxu0 0
  %605 = vmatprep.mubr.bf16.mxu0 0
  %606 = vmatmul.mubr.bf16.gmra.mxu0 %v568
  %v607 = vpop.f32.mrf.mxu0
  %v608 = vadd.f32 0.0, %v607
  %v609 = vpop.f32.mrf.mxu0
  %v610 = vpop.f32.mrf.mxu0
  %v611 = vpop.f32.mrf.mxu0
  %612 = vdwg.mxu0
  %613 = vrot.lane.b32.xlu0 %v499, 112
  %v614 = vpop.permute.xlu0 %613
  %615 = vrot.lane.b32.xlu0 %v499, 80
  %v616 = vpop.permute.xlu0 %615
  %v618 = vsel %vm275, %v614, 0
  %v621 = vsel %vm275, %v616, 0
  %623 = vmatprep.subr.bf16.mxu0 0
  %624 = vmatpush1.bf16.xpose.msra.mxu0 0
  %625 = vmatprep.subr.bf16.mxu0 0
  %626 = vmatpush1.bf16.xpose.msra.mxu0 0
  %627 = vmatprep.subr.bf16.mxu0 0
  %628 = vmatpush1.bf16.xpose.msra.mxu0 0
  %629 = vmatprep.subr.bf16.mxu0 0
  %630 = vmatpush1.bf16.xpose.msra.mxu0 0
  %631 = vmatprep.subr.bf16.mxu0 0
  %632 = vmatpush1.bf16.xpose.msra.mxu0 0
  %633 = vmatprep.subr.bf16.mxu0 0
  %634 = vmatpush1.bf16.xpose.msra.mxu0 0
  %635 = vmatprep.subr.bf16.mxu0 0
  %636 = vmatpush1.bf16.xpose.msra.mxu0 0
  %637 = vmatprep.subr.bf16.mxu0 0
  %638 = vmatpush1.bf16.xpose.msra.mxu0 %v621
  %639 = vmatprep.subr.bf16.mxu0 0
  %640 = vmatpush2.bf16.xpose.msra.mxu0 0
  %641 = vmatprep.subr.bf16.mxu0 0
  %642 = vmatpush2.bf16.xpose.msra.mxu0 0
  %643 = vmatprep.subr.bf16.mxu0 0
  %644 = vmatpush2.bf16.xpose.msra.mxu0 0
  %645 = vmatprep.subr.bf16.mxu0 0
  %646 = vmatpush2.bf16.xpose.msra.mxu0 0
  %647 = vmatprep.subr.bf16.mxu0 0
  %648 = vmatpush2.bf16.xpose.msra.mxu0 0
  %649 = vmatprep.subr.bf16.mxu0 0
  %650 = vmatpush2.bf16.xpose.msra.mxu0 0
  %651 = vmatprep.subr.bf16.mxu0 0
  %652 = vmatpush2.bf16.xpose.msra.mxu0 0
  %653 = vmatprep.subr.bf16.mxu0 0
  %654 = vmatpush2.bf16.xpose.msra.mxu0 0
  %655 = vmatprep.mubr.bf16.mxu0 0
  %656 = vmatmul.mubr.bf16.gmra.mxu0 %v618
  %v657 = vpop.f32.mrf.mxu0
  %v658 = vadd.f32 %v503, %v657
  %v659 = vpop.f32.mrf.mxu0
  %v660 = vpop.f32.mrf.mxu0
  %v661 = vpop.f32.mrf.mxu0
  %662 = vdwg.mxu0
  %v663 = vsel %vm322, %v658, -inf
  %664 = vmax.xlane.f32.xlu0 %v663
  %v665 = vpop.xlane.xlu0 %664
  %v666 = vsub.f32 %v658, %v665
  %v667 = vmul.f32 %v666, 1.442695
  %v668 = vpow.pop %v667
  %v669 = vsel %vm322, %v668, 0.0
  %670 = vadd.xlane.f32.xlu0 %v669
  %v671 = vpop.xlane.xlu0 %670
  %v672 = vrcp.pop %v671
  %v673 = vmul.f32 %v668, %v672
  %v674 = vpack.c.bf16 %v673, %v673
  %675 = vrot.lane.b32.xlu0 %v499, 48
  %v676 = vpop.permute.xlu0 %675
  %v678 = vsel %vm322, %v674, 0
  %v681 = vsel %vm340, %v676, 0
  %683 = vmatprep.subr.bf16.mxu0 0
  %684 = vmatpush1.bf16.msra.mxu0 0
  %685 = vmatprep.subr.bf16.mxu0 0
  %686 = vmatpush1.bf16.msra.mxu0 0
  %687 = vmatprep.subr.bf16.mxu0 0
  %688 = vmatpush1.bf16.msra.mxu0 0
  %689 = vmatprep.subr.bf16.mxu0 0
  %690 = vmatpush1.bf16.msra.mxu0 0
  %691 = vmatprep.subr.bf16.mxu0 0
  %692 = vmatpush1.bf16.msra.mxu0 0
  %693 = vmatprep.subr.bf16.mxu0 0
  %694 = vmatpush1.bf16.msra.mxu0 0
  %695 = vmatprep.subr.bf16.mxu0 0
  %696 = vmatpush1.bf16.msra.mxu0 0
  %697 = vmatprep.subr.bf16.mxu0 0
  %698 = vmatpush1.bf16.msra.mxu0 %v681
  %699 = vmatprep.subr.bf16.mxu0 0
  %700 = vmatpush2.bf16.msra.mxu0 0
  %701 = vmatprep.subr.bf16.mxu0 0
  %702 = vmatpush2.bf16.msra.mxu0 0
  %703 = vmatprep.subr.bf16.mxu0 0
  %704 = vmatpush2.bf16.msra.mxu0 0
  %705 = vmatprep.subr.bf16.mxu0 0
  %706 = vmatpush2.bf16.msra.mxu0 0
  %707 = vmatprep.subr.bf16.mxu0 0
  %708 = vmatpush2.bf16.msra.mxu0 0
  %709 = vmatprep.subr.bf16.mxu0 0
  %710 = vmatpush2.bf16.msra.mxu0 0
  %711 = vmatprep.subr.bf16.mxu0 0
  %712 = vmatpush2.bf16.msra.mxu0 0
  %713 = vmatprep.subr.bf16.mxu0 0
  %714 = vmatpush2.bf16.msra.mxu0 0
  %715 = vmatprep.mubr.bf16.mxu0 0
  %716 = vmatmul.mubr.bf16.gmra.mxu0 %v678
  %v717 = vpop.f32.mrf.mxu0
  %v718 = vadd.f32 0.0, %v717
  %v719 = vpop.f32.mrf.mxu0
  %v720 = vpop.f32.mrf.mxu0
  %v721 = vpop.f32.mrf.mxu0
  %722 = vdwg.mxu0
  %724 = vrot.lane.b32.xlu0 %v718, 16
  %v725 = vpop.permute.xlu0 %724
  %v727 = vsel %vm275, %v608, %v725
  %v728 = vpack.c.bf16 %v727, %v498
  %v730 = vlaneseq
  %v731 = vshrl.u32 %v730, 7
  %v732 = vsub.s32 0, %v731
  %v733 = vrot.slane %v185, %v732
  %v739 = vunpack.c.l.b16 %v181
  %v740 = vunpack.c.l.b16 %v182
  %v741 = vunpack.c.l.b16 %v183
  %v742 = vunpack.c.l.b16 %v184
  %v743 = vpack.c.b16 %v740, %v739
  %v744 = vpack.c.b16 %v742, %v741
  %v748 = vsel %vm132, %v728, 0
  %750 = vmatprep.subr.bf16.mxu0 0
  %751 = vmatpush1.bf16.msra.mxu0 0
  %752 = vmatprep.subr.bf16.mxu0 0
  %753 = vmatpush1.bf16.msra.mxu0 0
  %754 = vmatprep.subr.bf16.mxu0 0
  %755 = vmatpush1.bf16.msra.mxu0 0
  %756 = vmatprep.subr.bf16.mxu0 0
  %757 = vmatpush1.bf16.msra.mxu0 0
  %758 = vmatprep.subr.bf16.mxu0 0
  %759 = vmatpush1.bf16.msra.mxu0 0
  %760 = vmatprep.subr.bf16.mxu0 0
  %761 = vmatpush1.bf16.msra.mxu0 0
  %762 = vmatprep.subr.bf16.mxu0 0
  %763 = vmatpush1.bf16.msra.mxu0 %v744
  %764 = vmatprep.subr.bf16.mxu0 0
  %765 = vmatpush1.bf16.msra.mxu0 %v743
  %766 = vmatprep.subr.bf16.mxu0 0
  %767 = vmatpush2.bf16.msra.mxu0 0
  %768 = vmatprep.subr.bf16.mxu0 0
  %769 = vmatpush2.bf16.msra.mxu0 0
  %770 = vmatprep.subr.bf16.mxu0 0
  %771 = vmatpush2.bf16.msra.mxu0 0
  %772 = vmatprep.subr.bf16.mxu0 0
  %773 = vmatpush2.bf16.msra.mxu0 0
  %774 = vmatprep.subr.bf16.mxu0 0
  %775 = vmatpush2.bf16.msra.mxu0 0
  %776 = vmatprep.subr.bf16.mxu0 0
  %777 = vmatpush2.bf16.msra.mxu0 0
  %778 = vmatprep.subr.bf16.mxu0 0
  %779 = vmatpush2.bf16.msra.mxu0 0
  %780 = vmatprep.subr.bf16.mxu0 0
  %781 = vmatpush2.bf16.msra.mxu0 0
  %782 = vmatprep.mubr.bf16.mxu0 0
  %783 = vmatmul.mubr.bf16.gmra.mxu0 %v748
  %v784 = vpop.f32.mrf.mxu0
  %v785 = vadd.f32 %v733, %v784
  %v786 = vpop.f32.mrf.mxu0
  %v787 = vpop.f32.mrf.mxu0
  %v788 = vadd.f32 %v733, %v787
  %v789 = vpop.f32.mrf.mxu0
  %790 = vdwg.mxu0
  %v791 = vadd.f32 %v785, %v174
  %v792 = vadd.f32 %v788, %v175
  %v793 = vsel %vm132, %v791, 0.0
  %794 = vadd.xlane.f32.xlu0 %v793
  %v795 = vpop.xlane.xlu0 %794
  %v796 = vsel %vm132, %v792, 0.0
  %797 = vadd.xlane.f32.xlu0 %v796
  %v798 = vpop.xlane.xlu0 %797
  %v799 = vmul.f32 %v795, %v139
  %v800 = vmul.f32 %v798, %v139
  %v801 = vsub.f32 %v791, %v799
  %v802 = vsub.f32 %v792, %v800
  %v803 = vmul.f32 %v801, %v801
  %v804 = vmul.f32 %v802, %v802
  %v805 = vsel %vm132, %v803, 0.0
  %806 = vadd.xlane.f32.xlu0 %v805
  %v807 = vpop.xlane.xlu0 %806
  %v808 = vsel %vm132, %v804, 0.0
  %809 = vadd.xlane.f32.xlu0 %v808
  %v810 = vpop.xlane.xlu0 %809
  %v811 = vmul.f32 %v807, %v139
  %v812 = vmul.f32 %v810, %v139
  %v813 = vadd.f32 %v811, 1e-12
  %v814 = vadd.f32 %v812, 1e-12
  %v815 = vrsqrt.pop %v813
  %v816 = vrsqrt.pop %v814
  %v817 = vmul.f32 %v801, %v815
  %v818 = vmul.f32 %v802, %v816
  %v820 = vlaneseq
  %v821 = vshrl.u32 %v820, 7
  %v822 = vsub.s32 0, %v821
  %v823 = vrot.slane %v186, %v822
  %v825 = vmul.f32 %v817, %v823
  %v826 = vmul.f32 %v818, %v823
  %v828 = vlaneseq
  %v829 = vshrl.u32 %v828, 7
  %v830 = vsub.s32 0, %v829
  %v831 = vrot.slane %v187, %v830
  %v833 = vadd.f32 %v825, %v831
  %v834 = vadd.f32 %v826, %v831
  %v835 = vpack.c.bf16 %v834, %v833
  %v837 = vlaneseq
  %v838 = vshrl.u32 %v837, 7
  %v839 = vsub.s32 0, %v838
  %v840 = vrot.slane %v192, %v839
  %v846 = vunpack.c.l.b16 %v188
  %v847 = vunpack.c.l.b16 %v189
  %v848 = vunpack.c.l.b16 %v190
  %v849 = vunpack.c.l.b16 %v191
  %v850 = vpack.c.b16 %v847, %v846
  %v851 = vpack.c.b16 %v849, %v848
  %v855 = vsel %vm132, %v835, 0
  %857 = vmatprep.subr.bf16.mxu0 0
  %858 = vmatpush1.bf16.msra.mxu0 0
  %859 = vmatprep.subr.bf16.mxu0 0
  %860 = vmatpush1.bf16.msra.mxu0 0
  %861 = vmatprep.subr.bf16.mxu0 0
  %862 = vmatpush1.bf16.msra.mxu0 0
  %863 = vmatprep.subr.bf16.mxu0 0
  %864 = vmatpush1.bf16.msra.mxu0 0
  %865 = vmatprep.subr.bf16.mxu0 0
  %866 = vmatpush1.bf16.msra.mxu0 0
  %867 = vmatprep.subr.bf16.mxu0 0
  %868 = vmatpush1.bf16.msra.mxu0 0
  %869 = vmatprep.subr.bf16.mxu0 0
  %870 = vmatpush1.bf16.msra.mxu0 %v851
  %871 = vmatprep.subr.bf16.mxu0 0
  %872 = vmatpush1.bf16.msra.mxu0 %v850
  %873 = vmatprep.subr.bf16.mxu0 0
  %874 = vmatpush2.bf16.msra.mxu0 0
  %875 = vmatprep.subr.bf16.mxu0 0
  %876 = vmatpush2.bf16.msra.mxu0 0
  %877 = vmatprep.subr.bf16.mxu0 0
  %878 = vmatpush2.bf16.msra.mxu0 0
  %879 = vmatprep.subr.bf16.mxu0 0
  %880 = vmatpush2.bf16.msra.mxu0 0
  %881 = vmatprep.subr.bf16.mxu0 0
  %882 = vmatpush2.bf16.msra.mxu0 0
  %883 = vmatprep.subr.bf16.mxu0 0
  %884 = vmatpush2.bf16.msra.mxu0 0
  %885 = vmatprep.subr.bf16.mxu0 0
  %886 = vmatpush2.bf16.msra.mxu0 0
  %887 = vmatprep.subr.bf16.mxu0 0
  %888 = vmatpush2.bf16.msra.mxu0 0
  %889 = vmatprep.mubr.bf16.mxu0 0
  %890 = vmatmul.mubr.bf16.gmra.mxu0 %v855
  %v891 = vpop.f32.mrf.mxu0
  %v892 = vadd.f32 %v840, %v891
  %v893 = vpop.f32.mrf.mxu0
  %v894 = vpop.f32.mrf.mxu0
  %v895 = vadd.f32 %v840, %v894
  %v896 = vpop.f32.mrf.mxu0
  %897 = vdwg.mxu0
  %v898 = vmul.f32 %v892, 0.5
  %v899 = vmul.f32 %v895, 0.5
  %v900 = vmul.f32 %v892, 0.044715
  %v901 = vmul.f32 %v895, 0.044715
  %v902 = vmul.f32 %v900, %v892
  %v903 = vmul.f32 %v901, %v895
  %v904 = vmul.f32 %v902, %v892
  %v905 = vmul.f32 %v903, %v895
  %v906 = vadd.f32 %v892, %v904
  %v907 = vadd.f32 %v895, %v905
  %v908 = vmul.f32 %v906, 0.7978846
  %v909 = vmul.f32 %v907, 0.7978846
  %v910 = vtanh.pop %v908
  %v911 = vtanh.pop %v909
  %v912 = vadd.f32 %v910, 1.0
  %v913 = vadd.f32 %v911, 1.0
  %v914 = vmul.f32 %v898, %v912
  %v915 = vmul.f32 %v899, %v913
  %v916 = vpack.c.bf16 %v915, %v914
  %v918 = vlaneseq
  %v919 = vshrl.u32 %v918, 7
  %v920 = vsub.s32 0, %v919
  %v921 = vrot.slane %v201, %v920
  %v931 = vunpack.c.l.b16 %v193
  %v932 = vunpack.c.l.b16 %v194
  %v933 = vunpack.c.l.b16 %v195
  %v934 = vunpack.c.l.b16 %v196
  %v935 = vunpack.c.l.b16 %v197
  %v936 = vunpack.c.l.b16 %v198
  %v937 = vunpack.c.l.b16 %v199
  %v938 = vunpack.c.l.b16 %v200
  %v939 = vpack.c.b16 %v932, %v931
  %v940 = vpack.c.b16 %v934, %v933
  %v941 = vpack.c.b16 %v936, %v935
  %v942 = vpack.c.b16 %v938, %v937
  %vm947 = vcmask 523264
  %v949 = vsel %vm947, %v916, 0
  %951 = vmatprep.subr.bf16.mxu0 0
  %952 = vmatpush1.bf16.msra.mxu0 0
  %953 = vmatprep.subr.bf16.mxu0 0
  %954 = vmatpush1.bf16.msra.mxu0 0
  %955 = vmatprep.subr.bf16.mxu0 0
  %956 = vmatpush1.bf16.msra.mxu0 0
  %957 = vmatprep.subr.bf16.mxu0 0
  %958 = vmatpush1.bf16.msra.mxu0 0
  %959 = vmatprep.subr.bf16.mxu0 0
  %960 = vmatpush1.bf16.msra.mxu0 %v942
  %961 = vmatprep.subr.bf16.mxu0 0
  %962 = vmatpush1.bf16.msra.mxu0 %v941
  %963 = vmatprep.subr.bf16.mxu0 0
  %964 = vmatpush1.bf16.msra.mxu0 %v940
  %965 = vmatprep.subr.bf16.mxu0 0
  %966 = vmatpush1.bf16.msra.mxu0 %v939
  %967 = vmatprep.subr.bf16.mxu0 0
  %968 = vmatpush2.bf16.msra.mxu0 0
  %969 = vmatprep.subr.bf16.mxu0 0
  %970 = vmatpush2.bf16.msra.mxu0 0
  %971 = vmatprep.subr.bf16.mxu0 0
  %972 = vmatpush2.bf16.msra.mxu0 0
  %973 = vmatprep.subr.bf16.mxu0 0
  %974 = vmatpush2.bf16.msra.mxu0 0
  %975 = vmatprep.subr.bf16.mxu0 0
  %976 = vmatpush2.bf16.msra.mxu0 0
  %977 = vmatprep.subr.bf16.mxu0 0
  %978 = vmatpush2.bf16.msra.mxu0 0
  %979 = vmatprep.subr.bf16.mxu0 0
  %980 = vmatpush2.bf16.msra.mxu0 0
  %981 = vmatprep.subr.bf16.mxu0 0
  %982 = vmatpush2.bf16.msra.mxu0 0
  %983 = vmatprep.mubr.bf16.mxu0 0
  %984 = vmatmul.mubr.bf16.gmra.mxu0 %v949
  %v985 = vpop.f32.mrf.mxu0
  %v986 = vadd.f32 %v921, %v985
  %v987 = vpop.f32.mrf.mxu0
  %v988 = vpop.f32.mrf.mxu0
  %v989 = vadd.f32 %v921, %v988
  %v990 = vpop.f32.mrf.mxu0
  %991 = vdwg.mxu0
  %v992 = vadd.f32 %v986, %v833
  %v993 = vadd.f32 %v989, %v834
  %v994 = vsel %vm132, %v992, 0.0
  %995 = vadd.xlane.f32.xlu0 %v994
  %v996 = vpop.xlane.xlu0 %995
  %v997 = vsel %vm132, %v993, 0.0
  %998 = vadd.xlane.f32.xlu0 %v997
  %v999 = vpop.xlane.xlu0 %998
  %v1000 = vmul.f32 %v996, %v139
  %v1001 = vmul.f32 %v999, %v139
  %v1002 = vsub.f32 %v992, %v1000
  %v1003 = vsub.f32 %v993, %v1001
  %v1004 = vmul.f32 %v1002, %v1002
  %v1005 = vmul.f32 %v1003, %v1003
  %v1006 = vsel %vm132, %v1004, 0.0
  %1007 = vadd.xlane.f32.xlu0 %v1006
  %v1008 = vpop.xlane.xlu0 %1007
  %v1009 = vsel %vm132, %v1005, 0.0
  %1010 = vadd.xlane.f32.xlu0 %v1009
  %v1011 = vpop.xlane.xlu0 %1010
  %v1012 = vmul.f32 %v1008, %v139
  %v1013 = vmul.f32 %v1011, %v139
  %v1014 = vadd.f32 %v1012, 1e-12
  %v1015 = vadd.f32 %v1013, 1e-12
  %v1016 = vrsqrt.pop %v1014
  %v1017 = vrsqrt.pop %v1015
  %v1018 = vmul.f32 %v1002, %v1016
  %v1019 = vmul.f32 %v1003, %v1017
  %v1021 = vlaneseq
  %v1022 = vshrl.u32 %v1021, 7
  %v1023 = vsub.s32 0, %v1022
  %v1024 = vrot.slane %v202, %v1023
  %v1026 = vmul.f32 %v1018, %v1024
  %v1027 = vmul.f32 %v1019, %v1024
  %v1029 = vlaneseq
  %v1030 = vshrl.u32 %v1029, 7
  %v1031 = vsub.s32 0, %v1030
  %v1032 = vrot.slane %v203, %v1031
  %v1034 = vadd.f32 %v1026, %v1032
  %v1035 = vadd.f32 %v1027, %v1032
  %v1036 = vld [vmem:[%s33] sm:$0xf]
  %v1037 = vld [vmem:[%s33 + $0x4] sm:$0xf]
  %v1038 = vld [vmem:[%s33 + $0x8] sm:$0xf]
  %v1039 = vld [vmem:[%s33 + $0xc] sm:$0xf]
  %v1040 = vld [vmem:[%s35] sm:$0x1]
  %v1041 = vld [vmem:[%s37] sm:$0xf]
  %v1042 = vld [vmem:[%s37 + $0x4] sm:$0xf]
  %v1043 = vld [vmem:[%s37 + $0x8] sm:$0xf]
  %v1044 = vld [vmem:[%s37 + $0xc] sm:$0xf]
  %v1045 = vld [vmem:[%s39] sm:$0x1]
  %v1046 = vld [vmem:[%s41] sm:$0x1]
  %v1047 = vld [vmem:[%s43] sm:$0x1]
  %v1048 = vld [vmem:[%s45] sm:$0xf]
  %v1049 = vld [vmem:[%s45 + $0x4] sm:$0xf]
  %v1050 = vld [vmem:[%s45 + $0x8] sm:$0xf]
  %v1051 = vld [vmem:[%s45 + $0xc] sm:$0xf]
  %v1052 = vld [vmem:[%s47] sm:$0x1]
  %v1053 = vld [vmem:[%s49] sm:$0xf]
  %v1054 = vld [vmem:[%s49 + $0x4] sm:$0xf]
  %v1055 = vld [vmem:[%s49 + $0x8] sm:$0xf]
  %v1056 = vld [vmem:[%s49 + $0xc] sm:$0xf]
  %v1057 = vld [vmem:[%s49 + $0x10] sm:$0xf]
  %v1058 = vld [vmem:[%s49 + $0x14] sm:$0xf]
  %v1059 = vld [vmem:[%s49 + $0x18] sm:$0xf]
  %v1060 = vld [vmem:[%s49 + $0x1c] sm:$0xf]
  %v1061 = vld [vmem:[%s51] sm:$0x1]
  %v1062 = vld [vmem:[%s53] sm:$0x1]
  %v1063 = vld [vmem:[%s55] sm:$0x1]
  %v1064 = vpack.c.bf16 %v1035, %v1034
  %v1066 = vlaneseq
  %v1067 = vshrl.u32 %v1066, 7
  %v1068 = vsub.s32 0, %v1067
  %v1069 = vrot.slane %v1040, %v1068
  %v1075 = vunpack.c.l.b16 %v1036
  %v1076 = vunpack.c.l.b16 %v1037
  %v1077 = vunpack.c.l.b16 %v1038
  %v1078 = vunpack.c.l.b16 %v1039
  %v1079 = vpack.c.b16 %v1076, %v1075
  %v1080 = vpack.c.b16 %v1078, %v1077
  %v1084 = vsel %vm132, %v1064, 0
  %1086 = vmatprep.subr.bf16.mxu0 0
  %1087 = vmatpush1.bf16.msra.mxu0 0
  %1088 = vmatprep.subr.bf16.mxu0 0
  %1089 = vmatpush1.bf16.msra.mxu0 0
  %1090 = vmatprep.subr.bf16.mxu0 0
  %1091 = vmatpush1.bf16.msra.mxu0 0
  %1092 = vmatprep.subr.bf16.mxu0 0
  %1093 = vmatpush1.bf16.msra.mxu0 0
  %1094 = vmatprep.subr.bf16.mxu0 0
  %1095 = vmatpush1.bf16.msra.mxu0 0
  %1096 = vmatprep.subr.bf16.mxu0 0
  %1097 = vmatpush1.bf16.msra.mxu0 0
  %1098 = vmatprep.subr.bf16.mxu0 0
  %1099 = vmatpush1.bf16.msra.mxu0 %v1080
  %1100 = vmatprep.subr.bf16.mxu0 0
  %1101 = vmatpush1.bf16.msra.mxu0 %v1079
  %1102 = vmatprep.subr.bf16.mxu0 0
  %1103 = vmatpush2.bf16.msra.mxu0 0
  %1104 = vmatprep.subr.bf16.mxu0 0
  %1105 = vmatpush2.bf16.msra.mxu0 0
  %1106 = vmatprep.subr.bf16.mxu0 0
  %1107 = vmatpush2.bf16.msra.mxu0 0
  %1108 = vmatprep.subr.bf16.mxu0 0
  %1109 = vmatpush2.bf16.msra.mxu0 0
  %1110 = vmatprep.subr.bf16.mxu0 0
  %1111 = vmatpush2.bf16.msra.mxu0 0
  %1112 = vmatprep.subr.bf16.mxu0 0
  %1113 = vmatpush2.bf16.msra.mxu0 0
  %1114 = vmatprep.subr.bf16.mxu0 0
  %1115 = vmatpush2.bf16.msra.mxu0 0
  %1116 = vmatprep.subr.bf16.mxu0 0
  %1117 = vmatpush2.bf16.msra.mxu0 0
  %1118 = vmatprep.mubr.bf16.mxu0 0
  %1119 = vmatmul.mubr.bf16.gmra.mxu0 %v1084
  %v1120 = vpop.f32.mrf.mxu0
  %v1121 = vadd.f32 %v1069, %v1120
  %v1122 = vpop.f32.mrf.mxu0
  %v1123 = vpop.f32.mrf.mxu0
  %v1124 = vadd.f32 %v1069, %v1123
  %v1125 = vpop.f32.mrf.mxu0
  %1126 = vdwg.mxu0
  %v1127 = vpack.c.bf16 %v1121, %v1121
  %1129 = vrot.lane.b32.xlu0 %v1127, 96
  %v1130 = vpop.permute.xlu0 %1129
  %v1132 = vsel %vm275, %v1127, 0
  %v1135 = vsel %vm275, %v1130, 0
  %1137 = vmatprep.subr.bf16.mxu0 0
  %1138 = vmatpush1.bf16.xpose.msra.mxu0 0
  %1139 = vmatprep.subr.bf16.mxu0 0
  %1140 = vmatpush1.bf16.xpose.msra.mxu0 0
  %1141 = vmatprep.subr.bf16.mxu0 0
  %1142 = vmatpush1.bf16.xpose.msra.mxu0 0
  %1143 = vmatprep.subr.bf16.mxu0 0
  %1144 = vmatpush1.bf16.xpose.msra.mxu0 0
  %1145 = vmatprep.subr.bf16.mxu0 0
  %1146 = vmatpush1.bf16.xpose.msra.mxu0 0
  %1147 = vmatprep.subr.bf16.mxu0 0
  %1148 = vmatpush1.bf16.xpose.msra.mxu0 0
  %1149 = vmatprep.subr.bf16.mxu0 0
  %1150 = vmatpush1.bf16.xpose.msra.mxu0 0
  %1151 = vmatprep.subr.bf16.mxu0 0
  %1152 = vmatpush1.bf16.xpose.msra.mxu0 %v1135
  %1153 = vmatprep.subr.bf16.mxu0 0
  %1154 = vmatpush2.bf16.xpose.msra.mxu0 0
  %1155 = vmatprep.subr.bf16.mxu0 0
  %1156 = vmatpush2.bf16.xpose.msra.mxu0 0
  %1157 = vmatprep.subr.bf16.mxu0 0
  %1158 = vmatpush2.bf16.xpose.msra.mxu0 0
  %1159 = vmatprep.subr.bf16.mxu0 0
  %1160 = vmatpush2.bf16.xpose.msra.mxu0 0
  %1161 = vmatprep.subr.bf16.mxu0 0
  %1162 = vmatpush2.bf16.xpose.msra.mxu0 0
  %1163 = vmatprep.subr.bf16.mxu0 0
  %1164 = vmatpush2.bf16.xpose.msra.mxu0 0
  %1165 = vmatprep.subr.bf16.mxu0 0
  %1166 = vmatpush2.bf16.xpose.msra.mxu0 0
  %1167 = vmatprep.subr.bf16.mxu0 0
  %1168 = vmatpush2.bf16.xpose.msra.mxu0 0
  %1169 = vmatprep.mubr.bf16.mxu0 0
  %1170 = vmatmul.mubr.bf16.gmra.mxu0 %v1132
  %v1171 = vpop.f32.mrf.mxu0
  %v1172 = vadd.f32 %v271, %v1171
  %v1173 = vpop.f32.mrf.mxu0
  %v1174 = vpop.f32.mrf.mxu0
  %v1175 = vpop.f32.mrf.mxu0
  %1176 = vdwg.mxu0
  %v1177 = vsel %vm322, %v1172, -inf
  %1178 = vmax.xlane.f32.xlu0 %v1177
  %v1179 = vpop.xlane.xlu0 %1178
  %v1180 = vsub.f32 %v1172, %v1179
  %v1181 = vmul.f32 %v1180, 1.442695
  %v1182 = vpow.pop %v1181
  %v1183 = vsel %vm322, %v1182, 0.0
  %1184 = vadd.xlane.f32.xlu0 %v1183
  %v1185 = vpop.xlane.xlu0 %1184
  %v1186 = vrcp.pop %v1185
  %v1187 = vmul.f32 %v1182, %v1186
  %v1188 = vpack.c.bf16 %v1187, %v1187
  %1189 = vrot.lane.b32.xlu0 %v1127, 64
  %v1190 = vpop.permute.xlu0 %1189
  %v1192 = vsel %vm322, %v1188, 0
  %v1195 = vsel %vm340, %v1190, 0
  %1197 = vmatprep.subr.bf16.mxu0 0
  %1198 = vmatpush1.bf16.msra.mxu0 0
  %1199 = vmatprep.subr.bf16.mxu0 0
  %1200 = vmatpush1.bf16.msra.mxu0 0
  %1201 = vmatprep.subr.bf16.mxu0 0
  %1202 = vmatpush1.bf16.msra.mxu0 0
  %1203 = vmatprep.subr.bf16.mxu0 0
  %1204 = vmatpush1.bf16.msra.mxu0 0
  %1205 = vmatprep.subr.bf16.mxu0 0
  %1206 = vmatpush1.bf16.msra.mxu0 0
  %1207 = vmatprep.subr.bf16.mxu0 0
  %1208 = vmatpush1.bf16.msra.mxu0 0
  %1209 = vmatprep.subr.bf16.mxu0 0
  %1210 = vmatpush1.bf16.msra.mxu0 0
  %1211 = vmatprep.subr.bf16.mxu0 0
  %1212 = vmatpush1.bf16.msra.mxu0 %v1195
  %1213 = vmatprep.subr.bf16.mxu0 0
  %1214 = vmatpush2.bf16.msra.mxu0 0
  %1215 = vmatprep.subr.bf16.mxu0 0
  %1216 = vmatpush2.bf16.msra.mxu0 0
  %1217 = vmatprep.subr.bf16.mxu0 0
  %1218 = vmatpush2.bf16.msra.mxu0 0
  %1219 = vmatprep.subr.bf16.mxu0 0
  %1220 = vmatpush2.bf16.msra.mxu0 0
  %1221 = vmatprep.subr.bf16.mxu0 0
  %1222 = vmatpush2.bf16.msra.mxu0 0
  %1223 = vmatprep.subr.bf16.mxu0 0
  %1224 = vmatpush2.bf16.msra.mxu0 0
  %1225 = vmatprep.subr.bf16.mxu0 0
  %1226 = vmatpush2.bf16.msra.mxu0 0
  %1227 = vmatprep.subr.bf16.mxu0 0
  %1228 = vmatpush2.bf16.msra.mxu0 0
  %1229 = vmatprep.mubr.bf16.mxu0 0
  %1230 = vmatmul.mubr.bf16.gmra.mxu0 %v1192
  %v1231 = vpop.f32.mrf.mxu0
  %v1232 = vadd.f32 0.0, %v1231
  %v1233 = vpop.f32.mrf.mxu0
  %v1234 = vpop.f32.mrf.mxu0
  %v1235 = vpop.f32.mrf.mxu0
  %1236 = vdwg.mxu0
  %1237 = vrot.lane.b32.xlu0 %v1127, 112
  %v1238 = vpop.permute.xlu0 %1237
  %1239 = vrot.lane.b32.xlu0 %v1127, 80
  %v1240 = vpop.permute.xlu0 %1239
  %v1242 = vsel %vm275, %v1238, 0
  %v1245 = vsel %vm275, %v1240, 0
  %1247 = vmatprep.subr.bf16.mxu0 0
  %1248 = vmatpush1.bf16.xpose.msra.mxu0 0
  %1249 = vmatprep.subr.bf16.mxu0 0
  %1250 = vmatpush1.bf16.xpose.msra.mxu0 0
  %1251 = vmatprep.subr.bf16.mxu0 0
  %1252 = vmatpush1.bf16.xpose.msra.mxu0 0
  %1253 = vmatprep.subr.bf16.mxu0 0
  %1254 = vmatpush1.bf16.xpose.msra.mxu0 0
  %1255 = vmatprep.subr.bf16.mxu0 0
  %1256 = vmatpush1.bf16.xpose.msra.mxu0 0
  %1257 = vmatprep.subr.bf16.mxu0 0
  %1258 = vmatpush1.bf16.xpose.msra.mxu0 0
  %1259 = vmatprep.subr.bf16.mxu0 0
  %1260 = vmatpush1.bf16.xpose.msra.mxu0 0
  %1261 = vmatprep.subr.bf16.mxu0 0
  %1262 = vmatpush1.bf16.xpose.msra.mxu0 %v1245
  %1263 = vmatprep.subr.bf16.mxu0 0
  %1264 = vmatpush2.bf16.xpose.msra.mxu0 0
  %1265 = vmatprep.subr.bf16.mxu0 0
  %1266 = vmatpush2.bf16.xpose.msra.mxu0 0
  %1267 = vmatprep.subr.bf16.mxu0 0
  %1268 = vmatpush2.bf16.xpose.msra.mxu0 0
  %1269 = vmatprep.subr.bf16.mxu0 0
  %1270 = vmatpush2.bf16.xpose.msra.mxu0 0
  %1271 = vmatprep.subr.bf16.mxu0 0
  %1272 = vmatpush2.bf16.xpose.msra.mxu0 0
  %1273 = vmatprep.subr.bf16.mxu0 0
  %1274 = vmatpush2.bf16.xpose.msra.mxu0 0
  %1275 = vmatprep.subr.bf16.mxu0 0
  %1276 = vmatpush2.bf16.xpose.msra.mxu0 0
  %1277 = vmatprep.subr.bf16.mxu0 0
  %1278 = vmatpush2.bf16.xpose.msra.mxu0 0
  %1279 = vmatprep.mubr.bf16.mxu0 0
  %1280 = vmatmul.mubr.bf16.gmra.mxu0 %v1242
  %v1281 = vpop.f32.mrf.mxu0
  %v1282 = vadd.f32 %v271, %v1281
  %v1283 = vpop.f32.mrf.mxu0
  %v1284 = vpop.f32.mrf.mxu0
  %v1285 = vpop.f32.mrf.mxu0
  %1286 = vdwg.mxu0
  %v1287 = vsel %vm322, %v1282, -inf
  %1288 = vmax.xlane.f32.xlu0 %v1287
  %v1289 = vpop.xlane.xlu0 %1288
  %v1290 = vsub.f32 %v1282, %v1289
  %v1291 = vmul.f32 %v1290, 1.442695
  %v1292 = vpow.pop %v1291
  %v1293 = vsel %vm322, %v1292, 0.0
  %1294 = vadd.xlane.f32.xlu0 %v1293
  %v1295 = vpop.xlane.xlu0 %1294
  %v1296 = vrcp.pop %v1295
  %v1297 = vmul.f32 %v1292, %v1296
  %v1298 = vpack.c.bf16 %v1297, %v1297
  %1299 = vrot.lane.b32.xlu0 %v1127, 48
  %v1300 = vpop.permute.xlu0 %1299
  %v1302 = vsel %vm322, %v1298, 0
  %v1305 = vsel %vm340, %v1300, 0
  %1307 = vmatprep.subr.bf16.mxu0 0
  %1308 = vmatpush1.bf16.msra.mxu0 0
  %1309 = vmatprep.subr.bf16.mxu0 0
  %1310 = vmatpush1.bf16.msra.mxu0 0
  %1311 = vmatprep.subr.bf16.mxu0 0
  %1312 = vmatpush1.bf16.msra.mxu0 0
  %1313 = vmatprep.subr.bf16.mxu0 0
  %1314 = vmatpush1.bf16.msra.mxu0 0
  %1315 = vmatprep.subr.bf16.mxu0 0
  %1316 = vmatpush1.bf16.msra.mxu0 0
  %1317 = vmatprep.subr.bf16.mxu0 0
  %1318 = vmatpush1.bf16.msra.mxu0 0
  %1319 = vmatprep.subr.bf16.mxu0 0
  %1320 = vmatpush1.bf16.msra.mxu0 0
  %1321 = vmatprep.subr.bf16.mxu0 0
  %1322 = vmatpush1.bf16.msra.mxu0 %v1305
  %1323 = vmatprep.subr.bf16.mxu0 0
  %1324 = vmatpush2.bf16.msra.mxu0 0
  %1325 = vmatprep.subr.bf16.mxu0 0
  %1326 = vmatpush2.bf16.msra.mxu0 0
  %1327 = vmatprep.subr.bf16.mxu0 0
  %1328 = vmatpush2.bf16.msra.mxu0 0
  %1329 = vmatprep.subr.bf16.mxu0 0
  %1330 = vmatpush2.bf16.msra.mxu0 0
  %1331 = vmatprep.subr.bf16.mxu0 0
  %1332 = vmatpush2.bf16.msra.mxu0 0
  %1333 = vmatprep.subr.bf16.mxu0 0
  %1334 = vmatpush2.bf16.msra.mxu0 0
  %1335 = vmatprep.subr.bf16.mxu0 0
  %1336 = vmatpush2.bf16.msra.mxu0 0
  %1337 = vmatprep.subr.bf16.mxu0 0
  %1338 = vmatpush2.bf16.msra.mxu0 0
  %1339 = vmatprep.mubr.bf16.mxu0 0
  %1340 = vmatmul.mubr.bf16.gmra.mxu0 %v1302
  %v1341 = vpop.f32.mrf.mxu0
  %v1342 = vadd.f32 0.0, %v1341
  %v1343 = vpop.f32.mrf.mxu0
  %v1344 = vpop.f32.mrf.mxu0
  %v1345 = vpop.f32.mrf.mxu0
  %1346 = vdwg.mxu0
  %1348 = vrot.lane.b32.xlu0 %v1342, 16
  %v1349 = vpop.permute.xlu0 %1348
  %v1351 = vsel %vm275, %v1232, %v1349
  %v1352 = vpack.c.bf16 %v1124, %v1124
  %1354 = vrot.lane.b32.xlu0 %v1352, 96
  %v1355 = vpop.permute.xlu0 %1354
  %v1357 = vsel %vm275, %v1352, 0
  %v1360 = vsel %vm275, %v1355, 0
  %1362 = vmatprep.subr.bf16.mxu0 0
  %1363 = vmatpush1.bf16.xpose.msra.mxu0 0
  %1364 = vmatprep.subr.bf16.mxu0 0
  %1365 = vmatpush1.bf16.xpose.msra.mxu0 0
  %1366 = vmatprep.subr.bf16.mxu0 0
  %1367 = vmatpush1.bf16.xpose.msra.mxu0 0
  %1368 = vmatprep.subr.bf16.mxu0 0
  %1369 = vmatpush1.bf16.xpose.msra.mxu0 0
  %1370 = vmatprep.subr.bf16.mxu0 0
  %1371 = vmatpush1.bf16.xpose.msra.mxu0 0
  %1372 = vmatprep.subr.bf16.mxu0 0
  %1373 = vmatpush1.bf16.xpose.msra.mxu0 0
  %1374 = vmatprep.subr.bf16.mxu0 0
  %1375 = vmatpush1.bf16.xpose.msra.mxu0 0
  %1376 = vmatprep.subr.bf16.mxu0 0
  %1377 = vmatpush1.bf16.xpose.msra.mxu0 %v1360
  %1378 = vmatprep.subr.bf16.mxu0 0
  %1379 = vmatpush2.bf16.xpose.msra.mxu0 0
  %1380 = vmatprep.subr.bf16.mxu0 0
  %1381 = vmatpush2.bf16.xpose.msra.mxu0 0
  %1382 = vmatprep.subr.bf16.mxu0 0
  %1383 = vmatpush2.bf16.xpose.msra.mxu0 0
  %1384 = vmatprep.subr.bf16.mxu0 0
  %1385 = vmatpush2.bf16.xpose.msra.mxu0 0
  %1386 = vmatprep.subr.bf16.mxu0 0
  %1387 = vmatpush2.bf16.xpose.msra.mxu0 0
  %1388 = vmatprep.subr.bf16.mxu0 0
  %1389 = vmatpush2.bf16.xpose.msra.mxu0 0
  %1390 = vmatprep.subr.bf16.mxu0 0
  %1391 = vmatpush2.bf16.xpose.msra.mxu0 0
  %1392 = vmatprep.subr.bf16.mxu0 0
  %1393 = vmatpush2.bf16.xpose.msra.mxu0 0
  %1394 = vmatprep.mubr.bf16.mxu0 0
  %1395 = vmatmul.mubr.bf16.gmra.mxu0 %v1357
  %v1396 = vpop.f32.mrf.mxu0
  %v1397 = vadd.f32 %v503, %v1396
  %v1398 = vpop.f32.mrf.mxu0
  %v1399 = vpop.f32.mrf.mxu0
  %v1400 = vpop.f32.mrf.mxu0
  %1401 = vdwg.mxu0
  %v1402 = vsel %vm322, %v1397, -inf
  %1403 = vmax.xlane.f32.xlu0 %v1402
  %v1404 = vpop.xlane.xlu0 %1403
  %v1405 = vsub.f32 %v1397, %v1404
  %v1406 = vmul.f32 %v1405, 1.442695
  %v1407 = vpow.pop %v1406
  %v1408 = vsel %vm322, %v1407, 0.0
  %1409 = vadd.xlane.f32.xlu0 %v1408
  %v1410 = vpop.xlane.xlu0 %1409
  %v1411 = vrcp.pop %v1410
  %v1412 = vmul.f32 %v1407, %v1411
  %v1413 = vpack.c.bf16 %v1412, %v1412
  %1414 = vrot.lane.b32.xlu0 %v1352, 64
  %v1415 = vpop.permute.xlu0 %1414
  %v1417 = vsel %vm322, %v1413, 0
  %v1420 = vsel %vm340, %v1415, 0
  %1422 = vmatprep.subr.bf16.mxu0 0
  %1423 = vmatpush1.bf16.msra.mxu0 0
  %1424 = vmatprep.subr.bf16.mxu0 0
  %1425 = vmatpush1.bf16.msra.mxu0 0
  %1426 = vmatprep.subr.bf16.mxu0 0
  %1427 = vmatpush1.bf16.msra.mxu0 0
  %1428 = vmatprep.subr.bf16.mxu0 0
  %1429 = vmatpush1.bf16.msra.mxu0 0
  %1430 = vmatprep.subr.bf16.mxu0 0
  %1431 = vmatpush1.bf16.msra.mxu0 0
  %1432 = vmatprep.subr.bf16.mxu0 0
  %1433 = vmatpush1.bf16.msra.mxu0 0
  %1434 = vmatprep.subr.bf16.mxu0 0
  %1435 = vmatpush1.bf16.msra.mxu0 0
  %1436 = vmatprep.subr.bf16.mxu0 0
  %1437 = vmatpush1.bf16.msra.mxu0 %v1420
  %1438 = vmatprep.subr.bf16.mxu0 0
  %1439 = vmatpush2.bf16.msra.mxu0 0
  %1440 = vmatprep.subr.bf16.mxu0 0
  %1441 = vmatpush2.bf16.msra.mxu0 0
  %1442 = vmatprep.subr.bf16.mxu0 0
  %1443 = vmatpush2.bf16.msra.mxu0 0
  %1444 = vmatprep.subr.bf16.mxu0 0
  %1445 = vmatpush2.bf16.msra.mxu0 0
  %1446 = vmatprep.subr.bf16.mxu0 0
  %1447 = vmatpush2.bf16.msra.mxu0 0
  %1448 = vmatprep.subr.bf16.mxu0 0
  %1449 = vmatpush2.bf16.msra.mxu0 0
  %1450 = vmatprep.subr.bf16.mxu0 0
  %1451 = vmatpush2.bf16.msra.mxu0 0
  %1452 = vmatprep.subr.bf16.mxu0 0
  %1453 = vmatpush2.bf16.msra.mxu0 0
  %1454 = vmatprep.mubr.bf16.mxu0 0
  %1455 = vmatmul.mubr.bf16.gmra.mxu0 %v1417
  %v1456 = vpop.f32.mrf.mxu0
  %v1457 = vadd.f32 0.0, %v1456
  %v1458 = vpop.f32.mrf.mxu0
  %v1459 = vpop.f32.mrf.mxu0
  %v1460 = vpop.f32.mrf.mxu0
  %1461 = vdwg.mxu0
  %1462 = vrot.lane.b32.xlu0 %v1352, 112
  %v1463 = vpop.permute.xlu0 %1462
  %1464 = vrot.lane.b32.xlu0 %v1352, 80
  %v1465 = vpop.permute.xlu0 %1464
  %v1467 = vsel %vm275, %v1463, 0
  %v1470 = vsel %vm275, %v1465, 0
  %1472 = vmatprep.subr.bf16.mxu0 0
  %1473 = vmatpush1.bf16.xpose.msra.mxu0 0
  %1474 = vmatprep.subr.bf16.mxu0 0
  %1475 = vmatpush1.bf16.xpose.msra.mxu0 0
  %1476 = vmatprep.subr.bf16.mxu0 0
  %1477 = vmatpush1.bf16.xpose.msra.mxu0 0
  %1478 = vmatprep.subr.bf16.mxu0 0
  %1479 = vmatpush1.bf16.xpose.msra.mxu0 0
  %1480 = vmatprep.subr.bf16.mxu0 0
  %1481 = vmatpush1.bf16.xpose.msra.mxu0 0
  %1482 = vmatprep.subr.bf16.mxu0 0
  %1483 = vmatpush1.bf16.xpose.msra.mxu0 0
  %1484 = vmatprep.subr.bf16.mxu0 0
  %1485 = vmatpush1.bf16.xpose.msra.mxu0 0
  %1486 = vmatprep.subr.bf16.mxu0 0
  %1487 = vmatpush1.bf16.xpose.msra.mxu0 %v1470
  %1488 = vmatprep.subr.bf16.mxu0 0
  %1489 = vmatpush2.bf16.xpose.msra.mxu0 0
  %1490 = vmatprep.subr.bf16.mxu0 0
  %1491 = vmatpush2.bf16.xpose.msra.mxu0 0
  %1492 = vmatprep.subr.bf16.mxu0 0
  %1493 = vmatpush2.bf16.xpose.msra.mxu0 0
  %1494 = vmatprep.subr.bf16.mxu0 0
  %1495 = vmatpush2.bf16.xpose.msra.mxu0 0
  %1496 = vmatprep.subr.bf16.mxu0 0
  %1497 = vmatpush2.bf16.xpose.msra.mxu0 0
  %1498 = vmatprep.subr.bf16.mxu0 0
  %1499 = vmatpush2.bf16.xpose.msra.mxu0 0
  %1500 = vmatprep.subr.bf16.mxu0 0
  %1501 = vmatpush2.bf16.xpose.msra.mxu0 0
  %1502 = vmatprep.subr.bf16.mxu0 0
  %1503 = vmatpush2.bf16.xpose.msra.mxu0 0
  %1504 = vmatprep.mubr.bf16.mxu0 0
  %1505 = vmatmul.mubr.bf16.gmra.mxu0 %v1467
  %v1506 = vpop.f32.mrf.mxu0
  %v1507 = vadd.f32 %v503, %v1506
  %v1508 = vpop.f32.mrf.mxu0
  %v1509 = vpop.f32.mrf.mxu0
  %v1510 = vpop.f32.mrf.mxu0
  %1511 = vdwg.mxu0
  %v1512 = vsel %vm322, %v1507, -inf
  %1513 = vmax.xlane.f32.xlu0 %v1512
  %v1514 = vpop.xlane.xlu0 %1513
  %v1515 = vsub.f32 %v1507, %v1514
  %v1516 = vmul.f32 %v1515, 1.442695
  %v1517 = vpow.pop %v1516
  %v1518 = vsel %vm322, %v1517, 0.0
  %1519 = vadd.xlane.f32.xlu0 %v1518
  %v1520 = vpop.xlane.xlu0 %1519
  %v1521 = vrcp.pop %v1520
  %v1522 = vmul.f32 %v1517, %v1521
  %v1523 = vpack.c.bf16 %v1522, %v1522
  %1524 = vrot.lane.b32.xlu0 %v1352, 48
  %v1525 = vpop.permute.xlu0 %1524
  %v1527 = vsel %vm322, %v1523, 0
  %v1530 = vsel %vm340, %v1525, 0
  %1532 = vmatprep.subr.bf16.mxu0 0
  %1533 = vmatpush1.bf16.msra.mxu0 0
  %1534 = vmatprep.subr.bf16.mxu0 0
  %1535 = vmatpush1.bf16.msra.mxu0 0
  %1536 = vmatprep.subr.bf16.mxu0 0
  %1537 = vmatpush1.bf16.msra.mxu0 0
  %1538 = vmatprep.subr.bf16.mxu0 0
  %1539 = vmatpush1.bf16.msra.mxu0 0
  %1540 = vmatprep.subr.bf16.mxu0 0
  %1541 = vmatpush1.bf16.msra.mxu0 0
  %1542 = vmatprep.subr.bf16.mxu0 0
  %1543 = vmatpush1.bf16.msra.mxu0 0
  %1544 = vmatprep.subr.bf16.mxu0 0
  %1545 = vmatpush1.bf16.msra.mxu0 0
  %1546 = vmatprep.subr.bf16.mxu0 0
  %1547 = vmatpush1.bf16.msra.mxu0 %v1530
  %1548 = vmatprep.subr.bf16.mxu0 0
  %1549 = vmatpush2.bf16.msra.mxu0 0
  %1550 = vmatprep.subr.bf16.mxu0 0
  %1551 = vmatpush2.bf16.msra.mxu0 0
  %1552 = vmatprep.subr.bf16.mxu0 0
  %1553 = vmatpush2.bf16.msra.mxu0 0
  %1554 = vmatprep.subr.bf16.mxu0 0
  %1555 = vmatpush2.bf16.msra.mxu0 0
  %1556 = vmatprep.subr.bf16.mxu0 0
  %1557 = vmatpush2.bf16.msra.mxu0 0
  %1558 = vmatprep.subr.bf16.mxu0 0
  %1559 = vmatpush2.bf16.msra.mxu0 0
  %1560 = vmatprep.subr.bf16.mxu0 0
  %1561 = vmatpush2.bf16.msra.mxu0 0
  %1562 = vmatprep.subr.bf16.mxu0 0
  %1563 = vmatpush2.bf16.msra.mxu0 0
  %1564 = vmatprep.mubr.bf16.mxu0 0
  %1565 = vmatmul.mubr.bf16.gmra.mxu0 %v1527
  %v1566 = vpop.f32.mrf.mxu0
  %v1567 = vadd.f32 0.0, %v1566
  %v1568 = vpop.f32.mrf.mxu0
  %v1569 = vpop.f32.mrf.mxu0
  %v1570 = vpop.f32.mrf.mxu0
  %1571 = vdwg.mxu0
  %1573 = vrot.lane.b32.xlu0 %v1567, 16
  %v1574 = vpop.permute.xlu0 %1573
  %v1576 = vsel %vm275, %v1457, %v1574
  %v1577 = vpack.c.bf16 %v1576, %v1351
  %v1579 = vlaneseq
  %v1580 = vshrl.u32 %v1579, 7
  %v1581 = vsub.s32 0, %v1580
  %v1582 = vrot.slane %v1045, %v1581
  %v1588 = vunpack.c.l.b16 %v1041
  %v1589 = vunpack.c.l.b16 %v1042
  %v1590 = vunpack.c.l.b16 %v1043
  %v1591 = vunpack.c.l.b16 %v1044
  %v1592 = vpack.c.b16 %v1589, %v1588
  %v1593 = vpack.c.b16 %v1591, %v1590
  %v1597 = vsel %vm132, %v1577, 0
  %1599 = vmatprep.subr.bf16.mxu0 0
  %1600 = vmatpush1.bf16.msra.mxu0 0
  %1601 = vmatprep.subr.bf16.mxu0 0
  %1602 = vmatpush1.bf16.msra.mxu0 0
  %1603 = vmatprep.subr.bf16.mxu0 0
  %1604 = vmatpush1.bf16.msra.mxu0 0
  %1605 = vmatprep.subr.bf16.mxu0 0
  %1606 = vmatpush1.bf16.msra.mxu0 0
  %1607 = vmatprep.subr.bf16.mxu0 0
  %1608 = vmatpush1.bf16.msra.mxu0 0
  %1609 = vmatprep.subr.bf16.mxu0 0
  %1610 = vmatpush1.bf16.msra.mxu0 0
  %1611 = vmatprep.subr.bf16.mxu0 0
  %1612 = vmatpush1.bf16.msra.mxu0 %v1593
  %1613 = vmatprep.subr.bf16.mxu0 0
  %1614 = vmatpush1.bf16.msra.mxu0 %v1592
  %1615 = vmatprep.subr.bf16.mxu0 0
  %1616 = vmatpush2.bf16.msra.mxu0 0
  %1617 = vmatprep.subr.bf16.mxu0 0
  %1618 = vmatpush2.bf16.msra.mxu0 0
  %1619 = vmatprep.subr.bf16.mxu0 0
  %1620 = vmatpush2.bf16.msra.mxu0 0
  %1621 = vmatprep.subr.bf16.mxu0 0
  %1622 = vmatpush2.bf16.msra.mxu0 0
  %1623 = vmatprep.subr.bf16.mxu0 0
  %1624 = vmatpush2.bf16.msra.mxu0 0
  %1625 = vmatprep.subr.bf16.mxu0 0
  %1626 = vmatpush2.bf16.msra.mxu0 0
  %1627 = vmatprep.subr.bf16.mxu0 0
  %1628 = vmatpush2.bf16.msra.mxu0 0
  %1629 = vmatprep.subr.bf16.mxu0 0
  %1630 = vmatpush2.bf16.msra.mxu0 0
  %1631 = vmatprep.mubr.bf16.mxu0 0
  %1632 = vmatmul.mubr.bf16.gmra.mxu0 %v1597
  %v1633 = vpop.f32.mrf.mxu0
  %v1634 = vadd.f32 %v1582, %v1633
  %v1635 = vpop.f32.mrf.mxu0
  %v1636 = vpop.f32.mrf.mxu0
  %v1637 = vadd.f32 %v1582, %v1636
  %v1638 = vpop.f32.mrf.mxu0
  %1639 = vdwg.mxu0
  %v1640 = vadd.f32 %v1634, %v1034
  %v1641 = vadd.f32 %v1637, %v1035
  %v1642 = vsel %vm132, %v1640, 0.0
  %1643 = vadd.xlane.f32.xlu0 %v1642
  %v1644 = vpop.xlane.xlu0 %1643
  %v1645 = vsel %vm132, %v1641, 0.0
  %1646 = vadd.xlane.f32.xlu0 %v1645
  %v1647 = vpop.xlane.xlu0 %1646
  %v1648 = vmul.f32 %v1644, %v139
  %v1649 = vmul.f32 %v1647, %v139
  %v1650 = vsub.f32 %v1640, %v1648
  %v1651 = vsub.f32 %v1641, %v1649
  %v1652 = vmul.f32 %v1650, %v1650
  %v1653 = vmul.f32 %v1651, %v1651
  %v1654 = vsel %vm132, %v1652, 0.0
  %1655 = vadd.xlane.f32.xlu0 %v1654
  %v1656 = vpop.xlane.xlu0 %1655
  %v1657 = vsel %vm132, %v1653, 0.0
  %1658 = vadd.xlane.f32.xlu0 %v1657
  %v1659 = vpop.xlane.xlu0 %1658
  %v1660 = vmul.f32 %v1656, %v139
  %v1661 = vmul.f32 %v1659, %v139
  %v1662 = vadd.f32 %v1660, 1e-12
  %v1663 = vadd.f32 %v1661, 1e-12
  %v1664 = vrsqrt.pop %v1662
  %v1665 = vrsqrt.pop %v1663
  %v1666 = vmul.f32 %v1650, %v1664
  %v1667 = vmul.f32 %v1651, %v1665
  %v1669 = vlaneseq
  %v1670 = vshrl.u32 %v1669, 7
  %v1671 = vsub.s32 0, %v1670
  %v1672 = vrot.slane %v1046, %v1671
  %v1674 = vmul.f32 %v1666, %v1672
  %v1675 = vmul.f32 %v1667, %v1672
  %v1677 = vlaneseq
  %v1678 = vshrl.u32 %v1677, 7
  %v1679 = vsub.s32 0, %v1678
  %v1680 = vrot.slane %v1047, %v1679
  %v1682 = vadd.f32 %v1674, %v1680
  %v1683 = vadd.f32 %v1675, %v1680
  %v1684 = vpack.c.bf16 %v1683, %v1682
  %v1686 = vlaneseq
  %v1687 = vshrl.u32 %v1686, 7
  %v1688 = vsub.s32 0, %v1687
  %v1689 = vrot.slane %v1052, %v1688
  %v1695 = vunpack.c.l.b16 %v1048
  %v1696 = vunpack.c.l.b16 %v1049
  %v1697 = vunpack.c.l.b16 %v1050
  %v1698 = vunpack.c.l.b16 %v1051
  %v1699 = vpack.c.b16 %v1696, %v1695
  %v1700 = vpack.c.b16 %v1698, %v1697
  %v1704 = vsel %vm132, %v1684, 0
  %1706 = vmatprep.subr.bf16.mxu0 0
  %1707 = vmatpush1.bf16.msra.mxu0 0
  %1708 = vmatprep.subr.bf16.mxu0 0
  %1709 = vmatpush1.bf16.msra.mxu0 0
  %1710 = vmatprep.subr.bf16.mxu0 0
  %1711 = vmatpush1.bf16.msra.mxu0 0
  %1712 = vmatprep.subr.bf16.mxu0 0
  %1713 = vmatpush1.bf16.msra.mxu0 0
  %1714 = vmatprep.subr.bf16.mxu0 0
  %1715 = vmatpush1.bf16.msra.mxu0 0
  %1716 = vmatprep.subr.bf16.mxu0 0
  %1717 = vmatpush1.bf16.msra.mxu0 0
  %1718 = vmatprep.subr.bf16.mxu0 0
  %1719 = vmatpush1.bf16.msra.mxu0 %v1700
  %1720 = vmatprep.subr.bf16.mxu0 0
  %1721 = vmatpush1.bf16.msra.mxu0 %v1699
  %1722 = vmatprep.subr.bf16.mxu0 0
  %1723 = vmatpush2.bf16.msra.mxu0 0
  %1724 = vmatprep.subr.bf16.mxu0 0
  %1725 = vmatpush2.bf16.msra.mxu0 0
  %1726 = vmatprep.subr.bf16.mxu0 0
  %1727 = vmatpush2.bf16.msra.mxu0 0
  %1728 = vmatprep.subr.bf16.mxu0 0
  %1729 = vmatpush2.bf16.msra.mxu0 0
  %1730 = vmatprep.subr.bf16.mxu0 0
  %1731 = vmatpush2.bf16.msra.mxu0 0
  %1732 = vmatprep.subr.bf16.mxu0 0
  %1733 = vmatpush2.bf16.msra.mxu0 0
  %1734 = vmatprep.subr.bf16.mxu0 0
  %1735 = vmatpush2.bf16.msra.mxu0 0
  %1736 = vmatprep.subr.bf16.mxu0 0
  %1737 = vmatpush2.bf16.msra.mxu0 0
  %1738 = vmatprep.mubr.bf16.mxu0 0
  %1739 = vmatmul.mubr.bf16.gmra.mxu0 %v1704
  %v1740 = vpop.f32.mrf.mxu0
  %v1741 = vadd.f32 %v1689, %v1740
  %v1742 = vpop.f32.mrf.mxu0
  %v1743 = vpop.f32.mrf.mxu0
  %v1744 = vadd.f32 %v1689, %v1743
  %v1745 = vpop.f32.mrf.mxu0
  %1746 = vdwg.mxu0
  %v1747 = vmul.f32 %v1741, 0.5
  %v1748 = vmul.f32 %v1744, 0.5
  %v1749 = vmul.f32 %v1741, 0.044715
  %v1750 = vmul.f32 %v1744, 0.044715
  %v1751 = vmul.f32 %v1749, %v1741
  %v1752 = vmul.f32 %v1750, %v1744
  %v1753 = vmul.f32 %v1751, %v1741
  %v1754 = vmul.f32 %v1752, %v1744
  %v1755 = vadd.f32 %v1741, %v1753
  %v1756 = vadd.f32 %v1744, %v1754
  %v1757 = vmul.f32 %v1755, 0.7978846
  %v1758 = vmul.f32 %v1756, 0.7978846
  %v1759 = vtanh.pop %v1757
  %v1760 = vtanh.pop %v1758
  %v1761 = vadd.f32 %v1759, 1.0
  %v1762 = vadd.f32 %v1760, 1.0
  %v1763 = vmul.f32 %v1747, %v1761
  %v1764 = vmul.f32 %v1748, %v1762
  %v1765 = vpack.c.bf16 %v1764, %v1763
  %v1767 = vlaneseq
  %v1768 = vshrl.u32 %v1767, 7
  %v1769 = vsub.s32 0, %v1768
  %v1770 = vrot.slane %v1061, %v1769
  %v1780 = vunpack.c.l.b16 %v1053
  %v1781 = vunpack.c.l.b16 %v1054
  %v1782 = vunpack.c.l.b16 %v1055
  %v1783 = vunpack.c.l.b16 %v1056
  %v1784 = vunpack.c.l.b16 %v1057
  %v1785 = vunpack.c.l.b16 %v1058
  %v1786 = vunpack.c.l.b16 %v1059
  %v1787 = vunpack.c.l.b16 %v1060
  %v1788 = vpack.c.b16 %v1781, %v1780
  %v1789 = vpack.c.b16 %v1783, %v1782
  %v1790 = vpack.c.b16 %v1785, %v1784
  %v1791 = vpack.c.b16 %v1787, %v1786
  %v1797 = vsel %vm947, %v1765, 0
  %1799 = vmatprep.subr.bf16.mxu0 0
  %1800 = vmatpush1.bf16.msra.mxu0 0
  %1801 = vmatprep.subr.bf16.mxu0 0
  %1802 = vmatpush1.bf16.msra.mxu0 0
  %1803 = vmatprep.subr.bf16.mxu0 0
  %1804 = vmatpush1.bf16.msra.mxu0 0
  %1805 = vmatprep.subr.bf16.mxu0 0
  %1806 = vmatpush1.bf16.msra.mxu0 0
  %1807 = vmatprep.subr.bf16.mxu0 0
  %1808 = vmatpush1.bf16.msra.mxu0 %v1791
  %1809 = vmatprep.subr.bf16.mxu0 0
  %1810 = vmatpush1.bf16.msra.mxu0 %v1790
  %1811 = vmatprep.subr.bf16.mxu0 0
  %1812 = vmatpush1.bf16.msra.mxu0 %v1789
  %1813 = vmatprep.subr.bf16.mxu0 0
  %1814 = vmatpush1.bf16.msra.mxu0 %v1788
  %1815 = vmatprep.subr.bf16.mxu0 0
  %1816 = vmatpush2.bf16.msra.mxu0 0
  %1817 = vmatprep.subr.bf16.mxu0 0
  %1818 = vmatpush2.bf16.msra.mxu0 0
  %1819 = vmatprep.subr.bf16.mxu0 0
  %1820 = vmatpush2.bf16.msra.mxu0 0
  %1821 = vmatprep.subr.bf16.mxu0 0
  %1822 = vmatpush2.bf16.msra.mxu0 0
  %1823 = vmatprep.subr.bf16.mxu0 0
  %1824 = vmatpush2.bf16.msra.mxu0 0
  %1825 = vmatprep.subr.bf16.mxu0 0
  %1826 = vmatpush2.bf16.msra.mxu0 0
  %1827 = vmatprep.subr.bf16.mxu0 0
  %1828 = vmatpush2.bf16.msra.mxu0 0
  %1829 = vmatprep.subr.bf16.mxu0 0
  %1830 = vmatpush2.bf16.msra.mxu0 0
  %1831 = vmatprep.mubr.bf16.mxu0 0
  %1832 = vmatmul.mubr.bf16.gmra.mxu0 %v1797
  %v1833 = vpop.f32.mrf.mxu0
  %v1834 = vadd.f32 %v1770, %v1833
  %v1835 = vpop.f32.mrf.mxu0
  %v1836 = vpop.f32.mrf.mxu0
  %v1837 = vadd.f32 %v1770, %v1836
  %v1838 = vpop.f32.mrf.mxu0
  %1839 = vdwg.mxu0
  %v1840 = vadd.f32 %v1834, %v1682
  %v1841 = vadd.f32 %v1837, %v1683
  %v1842 = vsel %vm132, %v1840, 0.0
  %1843 = vadd.xlane.f32.xlu0 %v1842
  %v1844 = vpop.xlane.xlu0 %1843
  %v1845 = vsel %vm132, %v1841, 0.0
  %1846 = vadd.xlane.f32.xlu0 %v1845
  %v1847 = vpop.xlane.xlu0 %1846
  %v1848 = vmul.f32 %v1844, %v139
  %v1849 = vmul.f32 %v1847, %v139
  %v1850 = vsub.f32 %v1840, %v1848
  %v1851 = vsub.f32 %v1841, %v1849
  %v1852 = vmul.f32 %v1850, %v1850
  %v1853 = vmul.f32 %v1851, %v1851
  %v1854 = vsel %vm132, %v1852, 0.0
  %1855 = vadd.xlane.f32.xlu0 %v1854
  %v1856 = vpop.xlane.xlu0 %1855
  %v1857 = vsel %vm132, %v1853, 0.0
  %1858 = vadd.xlane.f32.xlu0 %v1857
  %v1859 = vpop.xlane.xlu0 %1858
  %v1860 = vmul.f32 %v1856, %v139
  %v1861 = vmul.f32 %v1859, %v139
  %v1862 = vadd.f32 %v1860, 1e-12
  %v1863 = vadd.f32 %v1861, 1e-12
  %v1864 = vrsqrt.pop %v1862
  %v1865 = vrsqrt.pop %v1863
  %v1866 = vmul.f32 %v1850, %v1864
  %v1867 = vmul.f32 %v1851, %v1865
  %v1869 = vlaneseq
  %v1870 = vshrl.u32 %v1869, 7
  %v1871 = vsub.s32 0, %v1870
  %v1872 = vrot.slane %v1062, %v1871
  %v1874 = vmul.f32 %v1866, %v1872
  %v1875 = vmul.f32 %v1867, %v1872
  %v1877 = vlaneseq
  %v1878 = vshrl.u32 %v1877, 7
  %v1879 = vsub.s32 0, %v1878
  %v1880 = vrot.slane %v1063, %v1879
  %v1882 = vadd.f32 %v1874, %v1880
  %v1883 = vadd.f32 %v1875, %v1880
  %v1884 = vpack.c.bf16 %v1883, %v1882
  %v1885 = vld [vmem:[%s57] sm:$0xf]
  %v1886 = vld [vmem:[%s57 + $0x4] sm:$0xf]
  %v1887 = vld [vmem:[%s57 + $0x8] sm:$0xf]
  %v1888 = vld [vmem:[%s57 + $0xc] sm:$0xf]
  %v1889 = vld [vmem:[%s59] sm:$0x1]
  %v1891 = vlaneseq
  %v1892 = vshrl.u32 %v1891, 7
  %v1893 = vsub.s32 0, %v1892
  %v1894 = vrot.slane %v1889, %v1893
  %v1900 = vunpack.c.l.b16 %v1885
  %v1901 = vunpack.c.l.b16 %v1886
  %v1902 = vunpack.c.l.b16 %v1887
  %v1903 = vunpack.c.l.b16 %v1888
  %v1904 = vpack.c.b16 %v1901, %v1900
  %v1905 = vpack.c.b16 %v1903, %v1902
  %v1909 = vsel %vm132, %v1884, 0
  %1911 = vmatprep.subr.bf16.mxu0 0
  %1912 = vmatpush1.bf16.msra.mxu0 0
  %1913 = vmatprep.subr.bf16.mxu0 0
  %1914 = vmatpush1.bf16.msra.mxu0 0
  %1915 = vmatprep.subr.bf16.mxu0 0
  %1916 = vmatpush1.bf16.msra.mxu0 0
  %1917 = vmatprep.subr.bf16.mxu0 0
  %1918 = vmatpush1.bf16.msra.mxu0 0
  %1919 = vmatprep.subr.bf16.mxu0 0
  %1920 = vmatpush1.bf16.msra.mxu0 0
  %1921 = vmatprep.subr.bf16.mxu0 0
  %1922 = vmatpush1.bf16.msra.mxu0 0
  %1923 = vmatprep.subr.bf16.mxu0 0
  %1924 = vmatpush1.bf16.msra.mxu0 %v1905
  %1925 = vmatprep.subr.bf16.mxu0 0
  %1926 = vmatpush1.bf16.msra.mxu0 %v1904
  %1927 = vmatprep.subr.bf16.mxu0 0
  %1928 = vmatpush2.bf16.msra.mxu0 0
  %1929 = vmatprep.subr.bf16.mxu0 0
  %1930 = vmatpush2.bf16.msra.mxu0 0
  %1931 = vmatprep.subr.bf16.mxu0 0
  %1932 = vmatpush2.bf16.msra.mxu0 0
  %1933 = vmatprep.subr.bf16.mxu0 0
  %1934 = vmatpush2.bf16.msra.mxu0 0
  %1935 = vmatprep.subr.bf16.mxu0 0
  %1936 = vmatpush2.bf16.msra.mxu0 0
  %1937 = vmatprep.subr.bf16.mxu0 0
  %1938 = vmatpush2.bf16.msra.mxu0 0
  %1939 = vmatprep.subr.bf16.mxu0 0
  %1940 = vmatpush2.bf16.msra.mxu0 0
  %1941 = vmatprep.subr.bf16.mxu0 0
  %1942 = vmatpush2.bf16.msra.mxu0 0
  %1943 = vmatprep.mubr.bf16.mxu0 0
  %1944 = vmatmul.mubr.bf16.gmra.mxu0 %v1909
  %v1945 = vpop.f32.mrf.mxu0
  %v1946 = vadd.f32 %v1894, %v1945
  %v1947 = vpop.f32.mrf.mxu0
  %v1948 = vpop.f32.mrf.mxu0
  %v1949 = vadd.f32 %v1894, %v1948
  %v1950 = vpop.f32.mrf.mxu0
  %1951 = vdwg.mxu0
  %1952 = vst [vmem:[%s61] sm:$0xff] %v1946
  %1953 = vst [vmem:[%s61 + $0x8] sm:$0xff] %v1949
  // Predicated region
  $region122: #{bert_ner_forward.1} parent=0 // pred_check
    _
  $region123: #{bert_ner_forward.1} parent=0 // pred_check_branch
    %1955 = sbr.rel (0) target = $region125
  $region124: #{bert_ner_forward.1} parent=0 // pred_region
    _
  $region125: #{bert_ner_forward.1} parent=0 // pred_fallthru
    _
  // Predicated region
  $region126: #{bert_ner_forward.1} parent=0 // pred_check
    _
  $region127: #{bert_ner_forward.1} parent=0 // pred_check_branch
    %1957 = sbr.rel (0) target = $region129
  $region128: #{bert_ner_forward.1} parent=0 // pred_region
    _
  $region129: #{bert_ner_forward.1} parent=0 // pred_fallthru
    _

</llo_original>
